<compile_context>
chip_gen: v7x
topology: tpu7x:2x2x1
jax: 0.10.0
libtpu: 0.0.40
codegen_flags: <defaults>
</compile_context>

<pallas_src>
import functools

import jax
import jax.numpy as jnp
from jax.experimental import pallas as pl
from jax.experimental.pallas import tpu as pltpu


_VMEM_LIMIT_BYTES = 32 * 1024 * 1024  # fits every TPU generation's VMEM


def _full_spec(shape):
    n = len(shape)
    return pl.BlockSpec(tuple(shape), lambda *_: (0,) * n)


def _compiler_params(grid_rank):
    return pltpu.CompilerParams(
        dimension_semantics=("arbitrary",) * grid_rank,
        vmem_limit_bytes=_VMEM_LIMIT_BYTES,
    )


# ----------------------------------------------------------------------------
# Pallas kernels
# ----------------------------------------------------------------------------
def _hyena_trunk_kernel(u0_ref, wf_ref, be_ref, ml_ref, wo_ref, bo_ref,
                        o_ref, u_acc, *, order):
    """One grid step == one Hyena layer.  Residual stream stays in VMEM scratch.

    Activations use a lane-dense [B, L*D] layout; every conv / projection is a
    single [B,128] @ [128,128] MXU matmul (bf16 operands, fp32 accumulate).
    """
    @pl.when(pl.program_id(0) == 0)
    def _():
        u_acc[...] = u0_ref[...]

    u = u_acc[...]                                   # [B, L*D] fp32
    ub = u.astype(jnp.bfloat16)

    # In-projection fused with the K=3 short causal depthwise conv
    # (precomputed composed matrix); one matmul per channel group.
    zs = []
    for g in range(order + 1):
        z = jnp.dot(ub, wf_ref[0, g], preferred_element_type=jnp.float32)
        zs.append(z + be_ref[0, g])

    # Gated long causal convs: depthwise Toeplitz matrix applied on the MXU.
    v = zs[order]
    for o in range(order):
        gated = (zs[o] * v).astype(jnp.bfloat16)
        v = jnp.dot(gated, ml_ref[0, o], preferred_element_type=jnp.float32)

    # Out-projection (+ bias) and residual add.
    y = jnp.dot(v.astype(jnp.bfloat16), wo_ref[0],
                preferred_element_type=jnp.float32)
    u_acc[...] = u + y + bo_ref[0]
    o_ref[...] = u_acc[...]


def _hyena_head_kernel(x_ref, w1_ref, b1_ref, w2_ref, b2_ref, w3_ref, b3_ref,
                       w4_ref, b4_ref, o_ref):
    """Mean-pool (folded into w1) + relu-Linear x3 + Linear, fully fused."""
    def lin(h, w_ref, b_ref, relu):
        y = jnp.dot(h.astype(jnp.bfloat16), w_ref[...],
                    preferred_element_type=jnp.float32) + b_ref[...]
        return jnp.maximum(y, 0.0) if relu else y

    h = lin(x_ref[...], w1_ref, b1_ref, True)
    h = lin(h, w2_ref, b2_ref, True)
    h = lin(h, w3_ref, b3_ref, True)
    o_ref[...] = lin(h, w4_ref, b4_ref, False)


def _sage_kernel(x_ref, a_ref, wc1s_ref, wc1n_ref, bc1_ref,
                 wc2s_ref, wc2n_ref, bc2_ref,
                 w1_ref, b1_ref, w2_ref, b2_ref, w3_ref, b3_ref, o_ref):
    """2x GraphSAGE-mean conv + 3-layer MLP head in a single kernel.

    [x || mean_nbr(x)] @ W is computed as x @ W_self + (A_norm @ x) @ W_neigh,
    which avoids an in-kernel lane concat.
    """
    bf16 = jnp.bfloat16
    f32 = jnp.float32

    x = x_ref[...].astype(bf16)
    a = a_ref[...].astype(bf16)

    agg1 = jnp.dot(a, x, preferred_element_type=f32).astype(bf16)
    h = (jnp.dot(x, wc1s_ref[...], preferred_element_type=f32)
         + jnp.dot(agg1, wc1n_ref[...], preferred_element_type=f32)
         + bc1_ref[...])
    h = jnp.maximum(h, 0.0).astype(bf16)

    agg2 = jnp.dot(a, h, preferred_element_type=f32).astype(bf16)
    h2 = (jnp.dot(h, wc2s_ref[...], preferred_element_type=f32)
          + jnp.dot(agg2, wc2n_ref[...], preferred_element_type=f32)
          + bc2_ref[...])

    m = jnp.maximum(jnp.dot(h2.astype(bf16), w1_ref[...],
                            preferred_element_type=f32) + b1_ref[...], 0.0)
    m = jnp.maximum(jnp.dot(m.astype(bf16), w2_ref[...],
                            preferred_element_type=f32) + b2_ref[...], 0.0)
    o_ref[...] = (jnp.dot(m.astype(bf16), w3_ref[...],
                          preferred_element_type=f32) + b3_ref[...])


# ----------------------------------------------------------------------------
# pallas_call wrappers
# ----------------------------------------------------------------------------
def hyena_trunk(u0, tp):
    B, LD = u0.shape
    num_layers, G = tp["wfused"].shape[:2]
    order = tp["mlong"].shape[1]
    return pl.pallas_call(
        functools.partial(_hyena_trunk_kernel, order=order),
        out_shape=jax.ShapeDtypeStruct((B, LD), jnp.float32),
        grid=(num_layers,),
        in_specs=[
            pl.BlockSpec((B, LD), lambda l: (0, 0)),
            pl.BlockSpec((1, G, LD, LD), lambda l: (l, 0, 0, 0)),
            pl.BlockSpec((1, G, 1, LD), lambda l: (l, 0, 0, 0)),
            pl.BlockSpec((1, order, LD, LD), lambda l: (l, 0, 0, 0)),
            pl.BlockSpec((1, LD, LD), lambda l: (l, 0, 0)),
            pl.BlockSpec((1, 1, LD), lambda l: (l, 0, 0)),
        ],
        out_specs=pl.BlockSpec((B, LD), lambda l: (0, 0)),
        scratch_shapes=[pltpu.VMEM((B, LD), jnp.float32)],
        compiler_params=_compiler_params(1),
    )(u0.astype(jnp.float32), tp["wfused"], tp["beff"], tp["mlong"],
      tp["wout"], tp["bout"])


def hyena_head(trunk_out, hp):
    B = trunk_out.shape[0]
    args = (trunk_out, hp["w1"], hp["b1"], hp["w2"], hp["b2"],
            hp["w3"], hp["b3"], hp["w4"], hp["b4"])
    return pl.pallas_call(
        _hyena_head_kernel,
        out_shape=jax.ShapeDtypeStruct((B, 1), jnp.float32),
        grid=(1,),
        in_specs=[_full_spec(a.shape) for a in args],
        out_specs=_full_spec((B, 1)),
        compiler_params=_compiler_params(1),
    )(*args)


def sage_forward(x, a_norm, sp):
    N = x.shape[0]
    args = (x.astype(jnp.float32), a_norm.astype(jnp.float32),
            sp["wc1_self"], sp["wc1_neigh"], sp["bc1"],
            sp["wc2_self"], sp["wc2_neigh"], sp["bc2"],
            sp["w1"], sp["b1"], sp["w2"], sp["b2"], sp["w3"], sp["b3"])
    return pl.pallas_call(
        _sage_kernel,
        out_shape=jax.ShapeDtypeStruct((N, 1), jnp.float32),
        grid=(1,),
        in_specs=[_full_spec(a.shape) for a in args],
        out_specs=_full_spec((N, 1)),
        compiler_params=_compiler_params(1),
    )(*args)


# ----------------------------------------------------------------------------
# Kernel-parameter precompute (plain JAX, done once outside the forward)
# ----------------------------------------------------------------------------
def _causal_coeffs(h, L):
    """h:[K,C] -> T:[L(src), L(dst), C] with T[s,t,c] = h[t-s,c]*1[0<=t-s<K]."""
    K = h.shape[0]
    s = jnp.arange(L)[:, None]
    t = jnp.arange(L)[None, :]
    diff = t - s
    valid = (diff >= 0) & (diff < K)
    taps = h[jnp.clip(diff, 0, K - 1)]                    # [L, L, C]
    return jnp.where(valid[:, :, None], taps.astype(jnp.float32), 0.0)


def _build_trunk_params(layers, L, D, order):
    G = order + 1
    LD = L * D
    eye_l = jnp.eye(L, dtype=jnp.float32)
    eye_d = jnp.eye(D, dtype=jnp.float32)
    wf, be, ml, wo, bo = [], [], [], [], []
    for lp in layers:
        w_in, b_in = lp["w_in"], lp["b_in"]               # [D, G*D], [G*D]
        short, h_long = lp["short_filter"], lp["h_long"]  # [3, G*D], [order,L,D]

        wf_l, be_l = [], []
        for g in range(G):
            w_g = w_in[:, g * D:(g + 1) * D]              # [D, D]
            h_g = short[:, g * D:(g + 1) * D]             # [3, D]
            b_g = b_in[g * D:(g + 1) * D]                 # [D]
            t_short = _causal_coeffs(h_g, L)              # [L, L, D]
            # Fused (in-proj o short-conv): M[s*D+d, t*D+c] = W[d,c]*h[t-s,c]*causal
            wf_l.append((t_short[:, None, :, :] * w_g[None, :, None, :])
                        .reshape(LD, LD))
            # Causal short conv of the time-constant bias.
            cums = jnp.cumsum(h_g, axis=0)                # [3, D]
            idx = jnp.minimum(jnp.arange(L), h_g.shape[0] - 1)
            be_l.append((b_g[None, :] * cums[idx]).reshape(1, LD))
        wf.append(jnp.stack(wf_l))
        be.append(jnp.stack(be_l))

        ml_l = []
        for o in range(order):
            t_long = _causal_coeffs(h_long[o], L)         # [L, L, D]
            ml_l.append((t_long[:, None, :, :] * eye_d[None, :, None, :])
                        .reshape(LD, LD))
        ml.append(jnp.stack(ml_l))

        wo.append(jnp.kron(eye_l, lp["w_out"]))           # [LD, LD]
        bo.append(jnp.tile(lp["b_out"], L).reshape(1, LD))

    return dict(
        wfused=jnp.stack(wf).astype(jnp.bfloat16),        # [Ln, G, LD, LD]
        beff=jnp.stack(be).astype(jnp.float32),           # [Ln, G, 1, LD]
        mlong=jnp.stack(ml).astype(jnp.bfloat16),         # [Ln, order, LD, LD]
        wout=jnp.stack(wo).astype(jnp.bfloat16),          # [Ln, LD, LD]
        bout=jnp.stack(bo).astype(jnp.float32),           # [Ln, 1, LD]
    )


def prepare_kernel_params(params, *, L, D, order):
    mega = params["mega"]
    head = dict(
        # mean-pool over L is folded into the first head matrix.
        w1=(jnp.tile(mega["w1"], (L, 1)) / L).astype(jnp.bfloat16),
        b1=mega["b1"].reshape(1, -1).astype(jnp.float32),
        w2=mega["w2"].astype(jnp.bfloat16),
        b2=mega["b2"].reshape(1, -1).astype(jnp.float32),
        w3=mega["w3"].astype(jnp.bfloat16),
        b3=mega["b3"].reshape(1, -1).astype(jnp.float32),
        w4=mega["w4"].astype(jnp.bfloat16),
        b4=mega["b4"].reshape(1, -1).astype(jnp.float32),
    )
    sage = params["sage"]
    f_in = sage["wc1"].shape[0] // 2
    hid = sage["wc2"].shape[0] // 2
    sagek = dict(
        wc1_self=sage["wc1"][:f_in].astype(jnp.bfloat16),
        wc1_neigh=sage["wc1"][f_in:].astype(jnp.bfloat16),
        bc1=sage["bc1"].reshape(1, -1).astype(jnp.float32),
        wc2_self=sage["wc2"][:hid].astype(jnp.bfloat16),
        wc2_neigh=sage["wc2"][hid:].astype(jnp.bfloat16),
        bc2=sage["bc2"].reshape(1, -1).astype(jnp.float32),
        w1=sage["w1"].astype(jnp.bfloat16),
        b1=sage["b1"].reshape(1, -1).astype(jnp.float32),
        w2=sage["w2"].astype(jnp.bfloat16),
        b2=sage["b2"].reshape(1, -1).astype(jnp.float32),
        w3=sage["w3"].astype(jnp.bfloat16),
        b3=sage["b3"].reshape(1, -1).astype(jnp.float32),
    )
    return dict(
        embedding=mega["embedding"].astype(jnp.float32),
        trunk=_build_trunk_params(mega["layers"], L, D, order),
        head=head,
        sage=sagek,
        fc_w=params["fc_w"].astype(jnp.float32),
        fc_b=params["fc_b"].astype(jnp.float32),
    )


# ----------------------------------------------------------------------------
# Forward (Pallas kernels + tiny XLA glue)
# ----------------------------------------------------------------------------
def hyena_graphsage_forward(x, a_norm, inputs_embeds, batch_size, kp):
    # Embedding lookup left to XLA (tiny gather).
    emb = jnp.take(kp["embedding"], inputs_embeds.astype(jnp.int32), axis=0)
    B, L, D = emb.shape
    u0 = emb.reshape(B, L * D)                        # lane-dense [B, L*D]

    trunk_out = hyena_trunk(u0, kp["trunk"])                     # 1 pallas_call
    hyena_logits = hyena_head(trunk_out, kp["head"])[:, 0]       # 1 pallas_call
    sage_emb = sage_forward(x, a_norm, kp["sage"])[:, 0]         # 1 pallas_call

    stacked = jnp.stack([hyena_logits, sage_emb[:batch_size]], axis=1)  # [B, 2]
    # TODO(synk): final 2->1 Linear + stack left to plain XLA (M=B, K=2, N=1 is
    # far below any useful TPU tile; a kernel launch would cost more than it).
    return (stacked @ kp["fc_w"] + kp["fc_b"])[:, 0]


# ----------------------------------------------------------------------------
# Pure-JAX fp32 reference (naive formulation) for the correctness check
# ----------------------------------------------------------------------------
def _ref_causal_conv(v, h):
    """y[t,c] = sum_k h[k,c] * v[t-k,c] (causal, depthwise)."""
    K = h.shape[0]
    L = v.shape[0]
    vp = jnp.pad(v, ((K - 1, 0), (0, 0)))
    out = jnp.zeros_like(v)
    for k in range(K):
        out = out + h[k] * vp[K - 1 - k:K - 1 - k + L]
    return out


def reference_forward(x, a_norm, inputs_embeds, batch_size, params):
    mega = params["mega"]
    emb = jnp.take(mega["embedding"], inputs_embeds.astype(jnp.int32), axis=0)
    D = emb.shape[-1]

    def hyena_block(u, lp):
        order = lp["h_long"].shape[0]
        z = u @ lp["w_in"] + lp["b_in"]
        z = _ref_causal_conv(z, lp["short_filter"])
        v = z[:, order * D:]
        for o in range(order):
            v = _ref_causal_conv(z[:, o * D:(o + 1) * D] * v, lp["h_long"][o])
        return u + v @ lp["w_out"] + lp["b_out"]

    def per_example(u):
        for lp in mega["layers"]:
            u = hyena_block(u, lp)
        pooled = u.mean(axis=0)
        h = jax.nn.relu(pooled @ mega["w1"] + mega["b1"])
        h = jax.nn.relu(h @ mega["w2"] + mega["b2"])
        h = jax.nn.relu(h @ mega["w3"] + mega["b3"])
        return (h @ mega["w4"] + mega["b4"])[0]

    hyena_logits = jax.vmap(per_example)(emb)

    sage = params["sage"]
    agg1 = a_norm @ x
    h = jax.nn.relu(jnp.concatenate([x, agg1], axis=1) @ sage["wc1"] + sage["bc1"])
    agg2 = a_norm @ h
    h = jnp.concatenate([h, agg2], axis=1) @ sage["wc2"] + sage["bc2"]
    m = jax.nn.relu(h @ sage["w1"] + sage["b1"])
    m = jax.nn.relu(m @ sage["w2"] + sage["b2"])
    sage_emb = (m @ sage["w3"] + sage["b3"])[:, 0]

    stacked = jnp.stack([hyena_logits, sage_emb[:batch_size]], axis=1)
    return (stacked @ params["fc_w"] + params["fc_b"])[:, 0]


# ----------------------------------------------------------------------------
# Deterministic parameter init (raw / unfused parameters)
# ----------------------------------------------------------------------------
def init_params(key, *, V, D, L, order, num_layers, H1, H2, H3,
                in_ch, hid, sh1, sh2):
    keys = iter(jax.random.split(key, 128))

    def dense(fan_in, fan_out):
        limit = (6.0 / (fan_in + fan_out)) ** 0.5
        w = jax.random.uniform(next(keys), (fan_in, fan_out), jnp.float32,
                               -limit, limit)
        b = 0.05 * jax.random.normal(next(keys), (fan_out,), jnp.float32)
        return w, b

    mega = {"embedding": 0.1 * jax.random.normal(next(keys), (V, D), jnp.float32),
            "layers": []}
    for _ in range(num_layers):
        w_in, b_in = dense(D, (order + 1) * D)
        w_out, b_out = dense(D, D)
        short = 0.3 * jax.random.normal(next(keys), (3, (order + 1) * D),
                                        jnp.float32)
        h_long = (0.3 / L) * jax.random.normal(next(keys), (order, L, D),
                                               jnp.float32)
        mega["layers"].append(dict(w_in=w_in, b_in=b_in, w_out=w_out,
                                   b_out=b_out, short_filter=short,
                                   h_long=h_long))
    mega["w1"], mega["b1"] = dense(D, H1)
    mega["w2"], mega["b2"] = dense(H1, H2)
    mega["w3"], mega["b3"] = dense(H2, H3)
    mega["w4"], mega["b4"] = dense(H3, 1)

    sage = {}
    sage["wc1"], sage["bc1"] = dense(2 * in_ch, hid)
    sage["wc2"], sage["bc2"] = dense(2 * hid, hid)
    sage["w1"], sage["b1"] = dense(hid, sh1)
    sage["w2"], sage["b2"] = dense(sh1, sh2)
    sage["w3"], sage["b3"] = dense(sh2, 1)

    fc_w, fc_b = dense(2, 1)
    return dict(mega=mega, sage=sage, fc_w=fc_w, fc_b=fc_b)


# ----------------------------------------------------------------------------
if __name__ == "__main__":
    B = 4            # batch_size
    L = 16           # num_features / sequence length
    D = 8            # token embedding dim (L * D = 128 -> lane-dense rows)
    V = 8            # token vocabulary
    ORDER, NUM_LAYERS = 2, 2
    H1, H2, H3 = 32, 16, 8           # scaled from hidden1/2/3 = 1000/500/200
    N_NODES, IN_CH, HID = 12, 8, 16  # graph nodes, one-hot width, hidden_channels
    SH1, SH2 = 16, 8                 # scaled SAGE MLP hidden1/hidden2 = 128/64

    key = jax.random.PRNGKey(0)
    k_params, k_tok = jax.random.split(key)

    params = init_params(k_params, V=V, D=D, L=L, order=ORDER,
                         num_layers=NUM_LAYERS, H1=H1, H2=H2, H3=H3,
                         in_ch=IN_CH, hid=HID, sh1=SH1, sh2=SH2)
    kparams = prepare_kernel_params(params, L=L, D=D, order=ORDER)

    # Hyena input: integer tokens [B, L]
    inputs_embeds = jax.random.randint(k_tok, (B, L), 0, V, dtype=jnp.int32)

    # Graph inputs: one-hot node features + bidirectional ring edge_index
    node_ids = jnp.arange(N_NODES)
    x = jax.nn.one_hot(node_ids % IN_CH, IN_CH, dtype=jnp.float32)   # [N, F]
    src = jnp.concatenate([node_ids, (node_ids + 1) % N_NODES])
    dst = jnp.concatenate([(node_ids + 1) % N_NODES, node_ids])
    edge_index = jnp.stack([src, dst]).astype(jnp.int32)             # [2, E]

    # Dense row-normalized adjacency for mean aggregation (wrapper glue).
    # TODO(synk): for large graphs replace this dense [N, N] matmul with a
    # scalar-prefetch gather / segment-sum aggregation kernel.
    a = jnp.zeros((N_NODES, N_NODES), jnp.float32)
    a = a.at[edge_index[1], edge_index[0]].add(1.0)
    deg = jnp.clip(a.sum(axis=1, keepdims=True), 1.0, None)
    a_norm = a / deg

    fwd = jax.jit(
        lambda xx, aa, tt: hyena_graphsage_forward(xx, aa, tt, B, kparams))
    logits = jax.block_until_ready(fwd(x, a_norm, inputs_embeds))

    # Correctness check vs. the naive pure-JAX fp32 reference (bf16 matmuls in
    # the kernels -> loose tolerance).
    ref = reference_forward(x, a_norm, inputs_embeds, B, params)

    assert logits.shape == (B,), logits.shape
    assert logits.dtype == jnp.float32, logits.dtype
    assert jnp.allclose(logits, ref, rtol=5e-2, atol=5e-2), (logits, ref)
    print("KERNEL_OK")
</pallas_src>

<mosaic_0001>
module attributes {stable_mosaic.version = 11 : i64} {
  func.func @_hyena_trunk_kernel(%arg0: i32, %arg1: memref<4x128xf32, #tpu.memory_space<vmem>>, %arg2: memref<1x3x128x128xbf16, #tpu.memory_space<vmem>>, %arg3: memref<1x3x1x128xf32, #tpu.memory_space<vmem>>, %arg4: memref<1x2x128x128xbf16, #tpu.memory_space<vmem>>, %arg5: memref<1x128x128xbf16, #tpu.memory_space<vmem>>, %arg6: memref<1x1x128xf32, #tpu.memory_space<vmem>>, %arg7: memref<4x128xf32, #tpu.memory_space<vmem>>, %arg8: memref<4x128xf32, #tpu.memory_space<vmem>>) attributes {dimension_semantics = [#tpu.dimension_semantics<arbitrary>], iteration_bounds = array<i64: 2>, scalar_prefetch = 0 : i64, scratch_operands = 1 : i64, tpu.core_type = #tpu.core_type<tc>, window_params = [{pipeline_mode = #tpu.pipeline_mode<synchronous>, transform_indices = @transform_0, window_bounds = array<i64: 4, 128>}, {transform_indices = @transform_1, window_bounds = array<i64: 1, 3, 128, 128>}, {transform_indices = @transform_2, window_bounds = array<i64: 1, 3, 1, 128>}, {transform_indices = @transform_3, window_bounds = array<i64: 1, 2, 128, 128>}, {transform_indices = @transform_4, window_bounds = array<i64: 1, 128, 128>}, {transform_indices = @transform_5, window_bounds = array<i64: 1, 1, 128>}, {pipeline_mode = #tpu.pipeline_mode<synchronous>, transform_indices = @transform_6, window_bounds = array<i64: 4, 128>}]} {
    %c0_i32 = arith.constant 0 : i32
    %0 = arith.cmpi eq, %arg0, %c0_i32 : i32
    %1 = arith.extui %0 : i1 to i32
    %c0_i32_0 = arith.constant 0 : i32
    %2 = arith.cmpi ne, %1, %c0_i32_0 : i32
    scf.if %2 {
      %c0_49 = arith.constant 0 : index
      %c0_50 = arith.constant 0 : index
      %48 = vector.load %arg1[%c0_49, %c0_50] : memref<4x128xf32, #tpu.memory_space<vmem>>, vector<4x128xf32>
      %c0_51 = arith.constant 0 : index
      %c0_52 = arith.constant 0 : index
      %49 = vector.load %arg8[%c0_51, %c0_52] : memref<4x128xf32, #tpu.memory_space<vmem>>, vector<4x128xf32>
      tpu.vector_store %arg8[%c0_51, %c0_52], %48 {strides = array<i32>} : memref<4x128xf32, #tpu.memory_space<vmem>>, vector<4x128xf32>,
    } else {
    }
    %c0 = arith.constant 0 : index
    %c0_1 = arith.constant 0 : index
    %3 = vector.load %arg8[%c0, %c0_1] : memref<4x128xf32, #tpu.memory_space<vmem>>, vector<4x128xf32>
    %4 = arith.truncf %3 : vector<4x128xf32> to vector<4x128xbf16>
    %c0_2 = arith.constant 0 : index
    %c0_3 = arith.constant 0 : index
    %c0_4 = arith.constant 0 : index
    %c0_5 = arith.constant 0 : index
    %5 = vector.load %arg2[%c0_2, %c0_3, %c0_4, %c0_5] : memref<1x3x128x128xbf16, #tpu.memory_space<vmem>>, vector<1x1x128x128xbf16>
    %6 = vector.shape_cast %5 : vector<1x1x128x128xbf16> to vector<128x128xbf16>
    %cst = arith.constant dense<0.000000e+00> : vector<4x128xf32>
    %7 = tpu.matmul %4, %6, %cst {dimension_numbers = #tpu.dot_dimension_numbers<[1], [0], [0], [1], [0, 0, 1, 1], [], []>} : vector<4x128xbf16>, vector<128x128xbf16>, vector<4x128xf32> -> vector<4x128xf32>
    %c0_6 = arith.constant 0 : index
    %c0_7 = arith.constant 0 : index
    %c0_8 = arith.constant 0 : index
    %c0_9 = arith.constant 0 : index
    %8 = vector.load %arg3[%c0_6, %c0_7, %c0_8, %c0_9] : memref<1x3x1x128xf32, #tpu.memory_space<vmem>>, vector<1x1x1x128xf32>
    %9 = vector.shape_cast %8 : vector<1x1x1x128xf32> to vector<1x128xf32>
    %10 = vector.broadcast %9 : vector<1x128xf32> to vector<4x128xf32>
    %11 = arith.addf %7, %10 : vector<4x128xf32>
    %c0_10 = arith.constant 0 : index
    %c1 = arith.constant 1 : index
    %c0_11 = arith.constant 0 : index
    %c0_12 = arith.constant 0 : index
    %12 = vector.load %arg2[%c0_10, %c1, %c0_11, %c0_12] : memref<1x3x128x128xbf16, #tpu.memory_space<vmem>>, vector<1x1x128x128xbf16>
    %13 = vector.shape_cast %12 : vector<1x1x128x128xbf16> to vector<128x128xbf16>
    %cst_13 = arith.constant dense<0.000000e+00> : vector<4x128xf32>
    %14 = tpu.matmul %4, %13, %cst_13 {dimension_numbers = #tpu.dot_dimension_numbers<[1], [0], [0], [1], [0, 0, 1, 1], [], []>} : vector<4x128xbf16>, vector<128x128xbf16>, vector<4x128xf32> -> vector<4x128xf32>
    %c0_14 = arith.constant 0 : index
    %c1_15 = arith.constant 1 : index
    %c0_16 = arith.constant 0 : index
    %c0_17 = arith.constant 0 : index
    %15 = vector.load %arg3[%c0_14, %c1_15, %c0_16, %c0_17] : memref<1x3x1x128xf32, #tpu.memory_space<vmem>>, vector<1x1x1x128xf32>
    %16 = vector.shape_cast %15 : vector<1x1x1x128xf32> to vector<1x128xf32>
    %17 = vector.broadcast %16 : vector<1x128xf32> to vector<4x128xf32>
    %18 = arith.addf %14, %17 : vector<4x128xf32>
    %c0_18 = arith.constant 0 : index
    %c2 = arith.constant 2 : index
    %c0_19 = arith.constant 0 : index
    %c0_20 = arith.constant 0 : index
    %19 = vector.load %arg2[%c0_18, %c2, %c0_19, %c0_20] : memref<1x3x128x128xbf16, #tpu.memory_space<vmem>>, vector<1x1x128x128xbf16>
    %20 = vector.shape_cast %19 : vector<1x1x128x128xbf16> to vector<128x128xbf16>
    %cst_21 = arith.constant dense<0.000000e+00> : vector<4x128xf32>
    %21 = tpu.matmul %4, %20, %cst_21 {dimension_numbers = #tpu.dot_dimension_numbers<[1], [0], [0], [1], [0, 0, 1, 1], [], []>} : vector<4x128xbf16>, vector<128x128xbf16>, vector<4x128xf32> -> vector<4x128xf32>
    %c0_22 = arith.constant 0 : index
    %c2_23 = arith.constant 2 : index
    %c0_24 = arith.constant 0 : index
    %c0_25 = arith.constant 0 : index
    %22 = vector.load %arg3[%c0_22, %c2_23, %c0_24, %c0_25] : memref<1x3x1x128xf32, #tpu.memory_space<vmem>>, vector<1x1x1x128xf32>
    %23 = vector.shape_cast %22 : vector<1x1x1x128xf32> to vector<1x128xf32>
    %24 = vector.broadcast %23 : vector<1x128xf32> to vector<4x128xf32>
    %25 = arith.addf %21, %24 : vector<4x128xf32>
    %26 = arith.mulf %11, %25 : vector<4x128xf32>
    %27 = arith.truncf %26 : vector<4x128xf32> to vector<4x128xbf16>
    %c0_26 = arith.constant 0 : index
    %c0_27 = arith.constant 0 : index
    %c0_28 = arith.constant 0 : index
    %c0_29 = arith.constant 0 : index
    %28 = vector.load %arg4[%c0_26, %c0_27, %c0_28, %c0_29] : memref<1x2x128x128xbf16, #tpu.memory_space<vmem>>, vector<1x1x128x128xbf16>
    %29 = vector.shape_cast %28 : vector<1x1x128x128xbf16> to vector<128x128xbf16>
    %cst_30 = arith.constant dense<0.000000e+00> : vector<4x128xf32>
    %30 = tpu.matmul %27, %29, %cst_30 {dimension_numbers = #tpu.dot_dimension_numbers<[1], [0], [0], [1], [0, 0, 1, 1], [], []>} : vector<4x128xbf16>, vector<128x128xbf16>, vector<4x128xf32> -> vector<4x128xf32>
    %31 = arith.mulf %18, %30 : vector<4x128xf32>
    %32 = arith.truncf %31 : vector<4x128xf32> to vector<4x128xbf16>
    %c0_31 = arith.constant 0 : index
    %c1_32 = arith.constant 1 : index
    %c0_33 = arith.constant 0 : index
    %c0_34 = arith.constant 0 : index
    %33 = vector.load %arg4[%c0_31, %c1_32, %c0_33, %c0_34] : memref<1x2x128x128xbf16, #tpu.memory_space<vmem>>, vector<1x1x128x128xbf16>
    %34 = vector.shape_cast %33 : vector<1x1x128x128xbf16> to vector<128x128xbf16>
    %cst_35 = arith.constant dense<0.000000e+00> : vector<4x128xf32>
    %35 = tpu.matmul %32, %34, %cst_35 {dimension_numbers = #tpu.dot_dimension_numbers<[1], [0], [0], [1], [0, 0, 1, 1], [], []>} : vector<4x128xbf16>, vector<128x128xbf16>, vector<4x128xf32> -> vector<4x128xf32>
    %36 = arith.truncf %35 : vector<4x128xf32> to vector<4x128xbf16>
    %c0_36 = arith.constant 0 : index
    %c0_37 = arith.constant 0 : index
    %c0_38 = arith.constant 0 : index
    %37 = vector.load %arg5[%c0_36, %c0_37, %c0_38] : memref<1x128x128xbf16, #tpu.memory_space<vmem>>, vector<1x128x128xbf16>
    %38 = vector.shape_cast %37 : vector<1x128x128xbf16> to vector<128x128xbf16>
    %cst_39 = arith.constant dense<0.000000e+00> : vector<4x128xf32>
    %39 = tpu.matmul %36, %38, %cst_39 {dimension_numbers = #tpu.dot_dimension_numbers<[1], [0], [0], [1], [0, 0, 1, 1], [], []>} : vector<4x128xbf16>, vector<128x128xbf16>, vector<4x128xf32> -> vector<4x128xf32>
    %40 = arith.addf %3, %39 : vector<4x128xf32>
    %c0_40 = arith.constant 0 : index
    %c0_41 = arith.constant 0 : index
    %c0_42 = arith.constant 0 : index
    %41 = vector.load %arg6[%c0_40, %c0_41, %c0_42] : memref<1x1x128xf32, #tpu.memory_space<vmem>>, vector<1x1x128xf32>
    %42 = vector.shape_cast %41 : vector<1x1x128xf32> to vector<1x128xf32>
    %43 = vector.broadcast %42 : vector<1x128xf32> to vector<4x128xf32>
    %44 = arith.addf %40, %43 : vector<4x128xf32>
    %c0_43 = arith.constant 0 : index
    %c0_44 = arith.constant 0 : index
    %45 = vector.load %arg8[%c0_43, %c0_44] : memref<4x128xf32, #tpu.memory_space<vmem>>, vector<4x128xf32>
    tpu.vector_store %arg8[%c0_43, %c0_44], %44 {strides = array<i32>} : memref<4x128xf32, #tpu.memory_space<vmem>>, vector<4x128xf32>,
    %c0_45 = arith.constant 0 : index
    %c0_46 = arith.constant 0 : index
    %46 = vector.load %arg8[%c0_45, %c0_46] : memref<4x128xf32, #tpu.memory_space<vmem>>, vector<4x128xf32>
    %c0_47 = arith.constant 0 : index
    %c0_48 = arith.constant 0 : index
    %47 = vector.load %arg7[%c0_47, %c0_48] : memref<4x128xf32, #tpu.memory_space<vmem>>, vector<4x128xf32>
    tpu.vector_store %arg7[%c0_47, %c0_48], %46 {strides = array<i32>} : memref<4x128xf32, #tpu.memory_space<vmem>>, vector<4x128xf32>,
    return
  }
  func.func @transform_0(%arg0: i32) -> (i32, i32) {
    %c0_i32 = arith.constant 0 : i32
    %c0_i32_0 = arith.constant 0 : i32
    %c0_i32_1 = arith.constant 0 : i32
    return %c0_i32, %c0_i32_0 : i32, i32
  }
  func.func @transform_1(%arg0: i32) -> (i32, i32, i32, i32) {
    %c0_i32 = arith.constant 0 : i32
    %c0_i32_0 = arith.constant 0 : i32
    %c0_i32_1 = arith.constant 0 : i32
    %c0_i32_2 = arith.constant 0 : i32
    return %arg0, %c0_i32, %c0_i32_0, %c0_i32_1 : i32, i32, i32, i32
  }
  func.func @transform_2(%arg0: i32) -> (i32, i32, i32, i32) {
    %c0_i32 = arith.constant 0 : i32
    %c0_i32_0 = arith.constant 0 : i32
    %c0_i32_1 = arith.constant 0 : i32
    %c0_i32_2 = arith.constant 0 : i32
    return %arg0, %c0_i32, %c0_i32_0, %c0_i32_1 : i32, i32, i32, i32
  }
  func.func @transform_3(%arg0: i32) -> (i32, i32, i32, i32) {
    %c0_i32 = arith.constant 0 : i32
    %c0_i32_0 = arith.constant 0 : i32
    %c0_i32_1 = arith.constant 0 : i32
    %c0_i32_2 = arith.constant 0 : i32
    return %arg0, %c0_i32, %c0_i32_0, %c0_i32_1 : i32, i32, i32, i32
  }
  func.func @transform_4(%arg0: i32) -> (i32, i32, i32) {
    %c0_i32 = arith.constant 0 : i32
    %c0_i32_0 = arith.constant 0 : i32
    %c0_i32_1 = arith.constant 0 : i32
    return %arg0, %c0_i32, %c0_i32_0 : i32, i32, i32
  }
  func.func @transform_5(%arg0: i32) -> (i32, i32, i32) {
    %c0_i32 = arith.constant 0 : i32
    %c0_i32_0 = arith.constant 0 : i32
    %c0_i32_1 = arith.constant 0 : i32
    return %arg0, %c0_i32, %c0_i32_0 : i32, i32, i32
  }
  func.func @transform_6(%arg0: i32) -> (i32, i32) {
    %c0_i32 = arith.constant 0 : i32
    %c0_i32_0 = arith.constant 0 : i32
    %c0_i32_1 = arith.constant 0 : i32
    return %c0_i32, %c0_i32_0 : i32, i32
  }
}

module attributes {stable_mosaic.version = 11 : i64} {
  func.func @_hyena_head_kernel(%arg0: i32, %arg1: memref<4x128xf32, #tpu.memory_space<vmem>>, %arg2: memref<128x32xbf16, #tpu.memory_space<vmem>>, %arg3: memref<1x32xf32, #tpu.memory_space<vmem>>, %arg4: memref<32x16xbf16, #tpu.memory_space<vmem>>, %arg5: memref<1x16xf32, #tpu.memory_space<vmem>>, %arg6: memref<16x8xbf16, #tpu.memory_space<vmem>>, %arg7: memref<1x8xf32, #tpu.memory_space<vmem>>, %arg8: memref<8x1xbf16, #tpu.memory_space<vmem>>, %arg9: memref<1x1xf32, #tpu.memory_space<vmem>>, %arg10: memref<4x1xf32, #tpu.memory_space<vmem>>) attributes {dimension_semantics = [#tpu.dimension_semantics<arbitrary>], iteration_bounds = array<i64: 1>, scalar_prefetch = 0 : i64, scratch_operands = 0 : i64, tpu.core_type = #tpu.core_type<tc>, window_params = [{pipeline_mode = #tpu.pipeline_mode<synchronous>, transform_indices = @transform_0, window_bounds = array<i64: 4, 128>}, {pipeline_mode = #tpu.pipeline_mode<synchronous>, transform_indices = @transform_1, window_bounds = array<i64: 128, 32>}, {pipeline_mode = #tpu.pipeline_mode<synchronous>, transform_indices = @transform_2, window_bounds = array<i64: 1, 32>}, {pipeline_mode = #tpu.pipeline_mode<synchronous>, transform_indices = @transform_3, window_bounds = array<i64: 32, 16>}, {pipeline_mode = #tpu.pipeline_mode<synchronous>, transform_indices = @transform_4, window_bounds = array<i64: 1, 16>}, {pipeline_mode = #tpu.pipeline_mode<synchronous>, transform_indices = @transform_5, window_bounds = array<i64: 16, 8>}, {pipeline_mode = #tpu.pipeline_mode<synchronous>, transform_indices = @transform_6, window_bounds = array<i64: 1, 8>}, {pipeline_mode = #tpu.pipeline_mode<synchronous>, transform_indices = @transform_7, window_bounds = array<i64: 8, 1>}, {pipeline_mode = #tpu.pipeline_mode<synchronous>, transform_indices = @transform_8, window_bounds = array<i64: 1, 1>}, {pipeline_mode = #tpu.pipeline_mode<synchronous>, transform_indices = @transform_9, window_bounds = array<i64: 4, 1>}]} {
    %c0 = arith.constant 0 : index
    %c0_0 = arith.constant 0 : index
    %0 = vector.load %arg1[%c0, %c0_0] : memref<4x128xf32, #tpu.memory_space<vmem>>, vector<4x128xf32>
    %1 = arith.truncf %0 : vector<4x128xf32> to vector<4x128xbf16>
    %c0_1 = arith.constant 0 : index
    %c0_2 = arith.constant 0 : index
    %2 = vector.load %arg2[%c0_1, %c0_2] : memref<128x32xbf16, #tpu.memory_space<vmem>>, vector<128x32xbf16>
    %cst = arith.constant dense<0.000000e+00> : vector<4x32xf32>
    %3 = tpu.matmul %1, %2, %cst {dimension_numbers = #tpu.dot_dimension_numbers<[1], [0], [0], [1], [0, 0, 1, 1], [], []>} : vector<4x128xbf16>, vector<128x32xbf16>, vector<4x32xf32> -> vector<4x32xf32>
    %c0_3 = arith.constant 0 : index
    %c0_4 = arith.constant 0 : index
    %4 = vector.load %arg3[%c0_3, %c0_4] : memref<1x32xf32, #tpu.memory_space<vmem>>, vector<1x32xf32>
    %5 = vector.broadcast %4 : vector<1x32xf32> to vector<4x32xf32>
    %6 = arith.addf %3, %5 : vector<4x32xf32>
    %cst_5 = arith.constant 0.000000e+00 : f32
    %7 = vector.broadcast %cst_5 : f32 to vector<4x32xf32>
    %8 = arith.maximumf %6, %7 : vector<4x32xf32>
    %9 = arith.truncf %8 : vector<4x32xf32> to vector<4x32xbf16>
    %c0_6 = arith.constant 0 : index
    %c0_7 = arith.constant 0 : index
    %10 = vector.load %arg4[%c0_6, %c0_7] : memref<32x16xbf16, #tpu.memory_space<vmem>>, vector<32x16xbf16>
    %cst_8 = arith.constant dense<0.000000e+00> : vector<4x16xf32>
    %11 = tpu.matmul %9, %10, %cst_8 {dimension_numbers = #tpu.dot_dimension_numbers<[1], [0], [0], [1], [0, 0, 1, 1], [], []>} : vector<4x32xbf16>, vector<32x16xbf16>, vector<4x16xf32> -> vector<4x16xf32>
    %c0_9 = arith.constant 0 : index
    %c0_10 = arith.constant 0 : index
    %12 = vector.load %arg5[%c0_9, %c0_10] : memref<1x16xf32, #tpu.memory_space<vmem>>, vector<1x16xf32>
    %13 = vector.broadcast %12 : vector<1x16xf32> to vector<4x16xf32>
    %14 = arith.addf %11, %13 : vector<4x16xf32>
    %cst_11 = arith.constant 0.000000e+00 : f32
    %15 = vector.broadcast %cst_11 : f32 to vector<4x16xf32>
    %16 = arith.maximumf %14, %15 : vector<4x16xf32>
    %17 = arith.truncf %16 : vector<4x16xf32> to vector<4x16xbf16>
    %c0_12 = arith.constant 0 : index
    %c0_13 = arith.constant 0 : index
    %18 = vector.load %arg6[%c0_12, %c0_13] : memref<16x8xbf16, #tpu.memory_space<vmem>>, vector<16x8xbf16>
    %cst_14 = arith.constant dense<0.000000e+00> : vector<4x8xf32>
    %19 = tpu.matmul %17, %18, %cst_14 {dimension_numbers = #tpu.dot_dimension_numbers<[1], [0], [0], [1], [0, 0, 1, 1], [], []>} : vector<4x16xbf16>, vector<16x8xbf16>, vector<4x8xf32> -> vector<4x8xf32>
    %c0_15 = arith.constant 0 : index
    %c0_16 = arith.constant 0 : index
    %20 = vector.load %arg7[%c0_15, %c0_16] : memref<1x8xf32, #tpu.memory_space<vmem>>, vector<1x8xf32>
    %21 = vector.broadcast %20 : vector<1x8xf32> to vector<4x8xf32>
    %22 = arith.addf %19, %21 : vector<4x8xf32>
    %cst_17 = arith.constant 0.000000e+00 : f32
    %23 = vector.broadcast %cst_17 : f32 to vector<4x8xf32>
    %24 = arith.maximumf %22, %23 : vector<4x8xf32>
    %25 = arith.truncf %24 : vector<4x8xf32> to vector<4x8xbf16>
    %c0_18 = arith.constant 0 : index
    %c0_19 = arith.constant 0 : index
    %26 = vector.load %arg8[%c0_18, %c0_19] : memref<8x1xbf16, #tpu.memory_space<vmem>>, vector<8x1xbf16>
    %cst_20 = arith.constant dense<0.000000e+00> : vector<4x1xf32>
    %27 = tpu.matmul %25, %26, %cst_20 {dimension_numbers = #tpu.dot_dimension_numbers<[1], [0], [0], [1], [0, 0, 1, 1], [], []>} : vector<4x8xbf16>, vector<8x1xbf16>, vector<4x1xf32> -> vector<4x1xf32>
    %c0_21 = arith.constant 0 : index
    %c0_22 = arith.constant 0 : index
    %28 = vector.load %arg9[%c0_21, %c0_22] : memref<1x1xf32, #tpu.memory_space<vmem>>, vector<1x1xf32>
    %29 = vector.broadcast %28 : vector<1x1xf32> to vector<4x1xf32>
    %30 = arith.addf %27, %29 : vector<4x1xf32>
    %c0_23 = arith.constant 0 : index
    %c0_24 = arith.constant 0 : index
    %31 = vector.load %arg10[%c0_23, %c0_24] : memref<4x1xf32, #tpu.memory_space<vmem>>, vector<4x1xf32>
    tpu.vector_store %arg10[%c0_23, %c0_24], %30 {strides = array<i32>} : memref<4x1xf32, #tpu.memory_space<vmem>>, vector<4x1xf32>,
    return
  }
  func.func @transform_0(%arg0: i32) -> (i32, i32) {
    %c0_i32 = arith.constant 0 : i32
    %c0_i32_0 = arith.constant 0 : i32
    %c0_i32_1 = arith.constant 0 : i32
    return %c0_i32, %c0_i32_0 : i32, i32
  }
  func.func @transform_1(%arg0: i32) -> (i32, i32) {
    %c0_i32 = arith.constant 0 : i32
    %c0_i32_0 = arith.constant 0 : i32
    %c0_i32_1 = arith.constant 0 : i32
    return %c0_i32, %c0_i32_0 : i32, i32
  }
  func.func @transform_2(%arg0: i32) -> (i32, i32) {
    %c0_i32 = arith.constant 0 : i32
    %c0_i32_0 = arith.constant 0 : i32
    %c0_i32_1 = arith.constant 0 : i32
    return %c0_i32, %c0_i32_0 : i32, i32
  }
  func.func @transform_3(%arg0: i32) -> (i32, i32) {
    %c0_i32 = arith.constant 0 : i32
    %c0_i32_0 = arith.constant 0 : i32
    %c0_i32_1 = arith.constant 0 : i32
    return %c0_i32, %c0_i32_0 : i32, i32
  }
  func.func @transform_4(%arg0: i32) -> (i32, i32) {
    %c0_i32 = arith.constant 0 : i32
    %c0_i32_0 = arith.constant 0 : i32
    %c0_i32_1 = arith.constant 0 : i32
    return %c0_i32, %c0_i32_0 : i32, i32
  }
  func.func @transform_5(%arg0: i32) -> (i32, i32) {
    %c0_i32 = arith.constant 0 : i32
    %c0_i32_0 = arith.constant 0 : i32
    %c0_i32_1 = arith.constant 0 : i32
    return %c0_i32, %c0_i32_0 : i32, i32
  }
  func.func @transform_6(%arg0: i32) -> (i32, i32) {
    %c0_i32 = arith.constant 0 : i32
    %c0_i32_0 = arith.constant 0 : i32
    %c0_i32_1 = arith.constant 0 : i32
    return %c0_i32, %c0_i32_0 : i32, i32
  }
  func.func @transform_7(%arg0: i32) -> (i32, i32) {
    %c0_i32 = arith.constant 0 : i32
    %c0_i32_0 = arith.constant 0 : i32
    %c0_i32_1 = arith.constant 0 : i32
    return %c0_i32, %c0_i32_0 : i32, i32
  }
  func.func @transform_8(%arg0: i32) -> (i32, i32) {
    %c0_i32 = arith.constant 0 : i32
    %c0_i32_0 = arith.constant 0 : i32
    %c0_i32_1 = arith.constant 0 : i32
    return %c0_i32, %c0_i32_0 : i32, i32
  }
  func.func @transform_9(%arg0: i32) -> (i32, i32) {
    %c0_i32 = arith.constant 0 : i32
    %c0_i32_0 = arith.constant 0 : i32
    %c0_i32_1 = arith.constant 0 : i32
    return %c0_i32, %c0_i32_0 : i32, i32
  }
}

module attributes {stable_mosaic.version = 11 : i64} {
  func.func @_sage_kernel(%arg0: i32, %arg1: memref<12x8xf32, #tpu.memory_space<vmem>>, %arg2: memref<12x12xf32, #tpu.memory_space<vmem>>, %arg3: memref<8x16xbf16, #tpu.memory_space<vmem>>, %arg4: memref<8x16xbf16, #tpu.memory_space<vmem>>, %arg5: memref<1x16xf32, #tpu.memory_space<vmem>>, %arg6: memref<16x16xbf16, #tpu.memory_space<vmem>>, %arg7: memref<16x16xbf16, #tpu.memory_space<vmem>>, %arg8: memref<1x16xf32, #tpu.memory_space<vmem>>, %arg9: memref<16x16xbf16, #tpu.memory_space<vmem>>, %arg10: memref<1x16xf32, #tpu.memory_space<vmem>>, %arg11: memref<16x8xbf16, #tpu.memory_space<vmem>>, %arg12: memref<1x8xf32, #tpu.memory_space<vmem>>, %arg13: memref<8x1xbf16, #tpu.memory_space<vmem>>, %arg14: memref<1x1xf32, #tpu.memory_space<vmem>>, %arg15: memref<12x1xf32, #tpu.memory_space<vmem>>) attributes {dimension_semantics = [#tpu.dimension_semantics<arbitrary>], iteration_bounds = array<i64: 1>, scalar_prefetch = 0 : i64, scratch_operands = 0 : i64, tpu.core_type = #tpu.core_type<tc>, window_params = [{pipeline_mode = #tpu.pipeline_mode<synchronous>, transform_indices = @transform_0, window_bounds = array<i64: 12, 8>}, {pipeline_mode = #tpu.pipeline_mode<synchronous>, transform_indices = @transform_1, window_bounds = array<i64: 12, 12>}, {pipeline_mode = #tpu.pipeline_mode<synchronous>, transform_indices = @transform_2, window_bounds = array<i64: 8, 16>}, {pipeline_mode = #tpu.pipeline_mode<synchronous>, transform_indices = @transform_3, window_bounds = array<i64: 8, 16>}, {pipeline_mode = #tpu.pipeline_mode<synchronous>, transform_indices = @transform_4, window_bounds = array<i64: 1, 16>}, {pipeline_mode = #tpu.pipeline_mode<synchronous>, transform_indices = @transform_5, window_bounds = array<i64: 16, 16>}, {pipeline_mode = #tpu.pipeline_mode<synchronous>, transform_indices = @transform_6, window_bounds = array<i64: 16, 16>}, {pipeline_mode = #tpu.pipeline_mode<synchronous>, transform_indices = @transform_7, window_bounds = array<i64: 1, 16>}, {pipeline_mode = #tpu.pipeline_mode<synchronous>, transform_indices = @transform_8, window_bounds = array<i64: 16, 16>}, {pipeline_mode = #tpu.pipeline_mode<synchronous>, transform_indices = @transform_9, window_bounds = array<i64: 1, 16>}, {pipeline_mode = #tpu.pipeline_mode<synchronous>, transform_indices = @transform_10, window_bounds = array<i64: 16, 8>}, {pipeline_mode = #tpu.pipeline_mode<synchronous>, transform_indices = @transform_11, window_bounds = array<i64: 1, 8>}, {pipeline_mode = #tpu.pipeline_mode<synchronous>, transform_indices = @transform_12, window_bounds = array<i64: 8, 1>}, {pipeline_mode = #tpu.pipeline_mode<synchronous>, transform_indices = @transform_13, window_bounds = array<i64: 1, 1>}, {pipeline_mode = #tpu.pipeline_mode<synchronous>, transform_indices = @transform_14, window_bounds = array<i64: 12, 1>}]} {
    %c0 = arith.constant 0 : index
    %c0_0 = arith.constant 0 : index
    %0 = vector.load %arg1[%c0, %c0_0] : memref<12x8xf32, #tpu.memory_space<vmem>>, vector<12x8xf32>
    %1 = arith.truncf %0 : vector<12x8xf32> to vector<12x8xbf16>
    %c0_1 = arith.constant 0 : index
    %c0_2 = arith.constant 0 : index
    %2 = vector.load %arg2[%c0_1, %c0_2] : memref<12x12xf32, #tpu.memory_space<vmem>>, vector<12x12xf32>
    %3 = arith.truncf %2 : vector<12x12xf32> to vector<12x12xbf16>
    %cst = arith.constant dense<0.000000e+00> : vector<12x8xf32>
    %4 = tpu.matmul %3, %1, %cst {dimension_numbers = #tpu.dot_dimension_numbers<[1], [0], [0], [1], [0, 0, 1, 1], [], []>} : vector<12x12xbf16>, vector<12x8xbf16>, vector<12x8xf32> -> vector<12x8xf32>
    %5 = arith.truncf %4 : vector<12x8xf32> to vector<12x8xbf16>
    %c0_3 = arith.constant 0 : index
    %c0_4 = arith.constant 0 : index
    %6 = vector.load %arg3[%c0_3, %c0_4] : memref<8x16xbf16, #tpu.memory_space<vmem>>, vector<8x16xbf16>
    %cst_5 = arith.constant dense<0.000000e+00> : vector<12x16xf32>
    %7 = tpu.matmul %1, %6, %cst_5 {dimension_numbers = #tpu.dot_dimension_numbers<[1], [0], [0], [1], [0, 0, 1, 1], [], []>} : vector<12x8xbf16>, vector<8x16xbf16>, vector<12x16xf32> -> vector<12x16xf32>
    %c0_6 = arith.constant 0 : index
    %c0_7 = arith.constant 0 : index
    %8 = vector.load %arg4[%c0_6, %c0_7] : memref<8x16xbf16, #tpu.memory_space<vmem>>, vector<8x16xbf16>
    %cst_8 = arith.constant dense<0.000000e+00> : vector<12x16xf32>
    %9 = tpu.matmul %5, %8, %cst_8 {dimension_numbers = #tpu.dot_dimension_numbers<[1], [0], [0], [1], [0, 0, 1, 1], [], []>} : vector<12x8xbf16>, vector<8x16xbf16>, vector<12x16xf32> -> vector<12x16xf32>
    %10 = arith.addf %7, %9 : vector<12x16xf32>
    %c0_9 = arith.constant 0 : index
    %c0_10 = arith.constant 0 : index
    %11 = vector.load %arg5[%c0_9, %c0_10] : memref<1x16xf32, #tpu.memory_space<vmem>>, vector<1x16xf32>
    %12 = vector.broadcast %11 : vector<1x16xf32> to vector<12x16xf32>
    %13 = arith.addf %10, %12 : vector<12x16xf32>
    %cst_11 = arith.constant 0.000000e+00 : f32
    %14 = vector.broadcast %cst_11 : f32 to vector<12x16xf32>
    %15 = arith.maximumf %13, %14 : vector<12x16xf32>
    %16 = arith.truncf %15 : vector<12x16xf32> to vector<12x16xbf16>
    %cst_12 = arith.constant dense<0.000000e+00> : vector<12x16xf32>
    %17 = tpu.matmul %3, %16, %cst_12 {dimension_numbers = #tpu.dot_dimension_numbers<[1], [0], [0], [1], [0, 0, 1, 1], [], []>} : vector<12x12xbf16>, vector<12x16xbf16>, vector<12x16xf32> -> vector<12x16xf32>
    %18 = arith.truncf %17 : vector<12x16xf32> to vector<12x16xbf16>
    %c0_13 = arith.constant 0 : index
    %c0_14 = arith.constant 0 : index
    %19 = vector.load %arg6[%c0_13, %c0_14] : memref<16x16xbf16, #tpu.memory_space<vmem>>, vector<16x16xbf16>
    %cst_15 = arith.constant dense<0.000000e+00> : vector<12x16xf32>
    %20 = tpu.matmul %16, %19, %cst_15 {dimension_numbers = #tpu.dot_dimension_numbers<[1], [0], [0], [1], [0, 0, 1, 1], [], []>} : vector<12x16xbf16>, vector<16x16xbf16>, vector<12x16xf32> -> vector<12x16xf32>
    %c0_16 = arith.constant 0 : index
    %c0_17 = arith.constant 0 : index
    %21 = vector.load %arg7[%c0_16, %c0_17] : memref<16x16xbf16, #tpu.memory_space<vmem>>, vector<16x16xbf16>
    %cst_18 = arith.constant dense<0.000000e+00> : vector<12x16xf32>
    %22 = tpu.matmul %18, %21, %cst_18 {dimension_numbers = #tpu.dot_dimension_numbers<[1], [0], [0], [1], [0, 0, 1, 1], [], []>} : vector<12x16xbf16>, vector<16x16xbf16>, vector<12x16xf32> -> vector<12x16xf32>
    %23 = arith.addf %20, %22 : vector<12x16xf32>
    %c0_19 = arith.constant 0 : index
    %c0_20 = arith.constant 0 : index
    %24 = vector.load %arg8[%c0_19, %c0_20] : memref<1x16xf32, #tpu.memory_space<vmem>>, vector<1x16xf32>
    %25 = vector.broadcast %24 : vector<1x16xf32> to vector<12x16xf32>
    %26 = arith.addf %23, %25 : vector<12x16xf32>
    %27 = arith.truncf %26 : vector<12x16xf32> to vector<12x16xbf16>
    %c0_21 = arith.constant 0 : index
    %c0_22 = arith.constant 0 : index
    %28 = vector.load %arg9[%c0_21, %c0_22] : memref<16x16xbf16, #tpu.memory_space<vmem>>, vector<16x16xbf16>
    %cst_23 = arith.constant dense<0.000000e+00> : vector<12x16xf32>
    %29 = tpu.matmul %27, %28, %cst_23 {dimension_numbers = #tpu.dot_dimension_numbers<[1], [0], [0], [1], [0, 0, 1, 1], [], []>} : vector<12x16xbf16>, vector<16x16xbf16>, vector<12x16xf32> -> vector<12x16xf32>
    %c0_24 = arith.constant 0 : index
    %c0_25 = arith.constant 0 : index
    %30 = vector.load %arg10[%c0_24, %c0_25] : memref<1x16xf32, #tpu.memory_space<vmem>>, vector<1x16xf32>
    %31 = vector.broadcast %30 : vector<1x16xf32> to vector<12x16xf32>
    %32 = arith.addf %29, %31 : vector<12x16xf32>
    %cst_26 = arith.constant 0.000000e+00 : f32
    %33 = vector.broadcast %cst_26 : f32 to vector<12x16xf32>
    %34 = arith.maximumf %32, %33 : vector<12x16xf32>
    %35 = arith.truncf %34 : vector<12x16xf32> to vector<12x16xbf16>
    %c0_27 = arith.constant 0 : index
    %c0_28 = arith.constant 0 : index
    %36 = vector.load %arg11[%c0_27, %c0_28] : memref<16x8xbf16, #tpu.memory_space<vmem>>, vector<16x8xbf16>
    %cst_29 = arith.constant dense<0.000000e+00> : vector<12x8xf32>
    %37 = tpu.matmul %35, %36, %cst_29 {dimension_numbers = #tpu.dot_dimension_numbers<[1], [0], [0], [1], [0, 0, 1, 1], [], []>} : vector<12x16xbf16>, vector<16x8xbf16>, vector<12x8xf32> -> vector<12x8xf32>
    %c0_30 = arith.constant 0 : index
    %c0_31 = arith.constant 0 : index
    %38 = vector.load %arg12[%c0_30, %c0_31] : memref<1x8xf32, #tpu.memory_space<vmem>>, vector<1x8xf32>
    %39 = vector.broadcast %38 : vector<1x8xf32> to vector<12x8xf32>
    %40 = arith.addf %37, %39 : vector<12x8xf32>
    %cst_32 = arith.constant 0.000000e+00 : f32
    %41 = vector.broadcast %cst_32 : f32 to vector<12x8xf32>
    %42 = arith.maximumf %40, %41 : vector<12x8xf32>
    %43 = arith.truncf %42 : vector<12x8xf32> to vector<12x8xbf16>
    %c0_33 = arith.constant 0 : index
    %c0_34 = arith.constant 0 : index
    %44 = vector.load %arg13[%c0_33, %c0_34] : memref<8x1xbf16, #tpu.memory_space<vmem>>, vector<8x1xbf16>
    %cst_35 = arith.constant dense<0.000000e+00> : vector<12x1xf32>
    %45 = tpu.matmul %43, %44, %cst_35 {dimension_numbers = #tpu.dot_dimension_numbers<[1], [0], [0], [1], [0, 0, 1, 1], [], []>} : vector<12x8xbf16>, vector<8x1xbf16>, vector<12x1xf32> -> vector<12x1xf32>
    %c0_36 = arith.constant 0 : index
    %c0_37 = arith.constant 0 : index
    %46 = vector.load %arg14[%c0_36, %c0_37] : memref<1x1xf32, #tpu.memory_space<vmem>>, vector<1x1xf32>
    %47 = vector.broadcast %46 : vector<1x1xf32> to vector<12x1xf32>
    %48 = arith.addf %45, %47 : vector<12x1xf32>
    %c0_38 = arith.constant 0 : index
    %c0_39 = arith.constant 0 : index
    %49 = vector.load %arg15[%c0_38, %c0_39] : memref<12x1xf32, #tpu.memory_space<vmem>>, vector<12x1xf32>
    tpu.vector_store %arg15[%c0_38, %c0_39], %48 {strides = array<i32>} : memref<12x1xf32, #tpu.memory_space<vmem>>, vector<12x1xf32>,
    return
  }
  func.func @transform_0(%arg0: i32) -> (i32, i32) {
    %c0_i32 = arith.constant 0 : i32
    %c0_i32_0 = arith.constant 0 : i32
    %c0_i32_1 = arith.constant 0 : i32
    return %c0_i32, %c0_i32_0 : i32, i32
  }
  func.func @transform_1(%arg0: i32) -> (i32, i32) {
    %c0_i32 = arith.constant 0 : i32
    %c0_i32_0 = arith.constant 0 : i32
    %c0_i32_1 = arith.constant 0 : i32
    return %c0_i32, %c0_i32_0 : i32, i32
  }
  func.func @transform_2(%arg0: i32) -> (i32, i32) {
    %c0_i32 = arith.constant 0 : i32
    %c0_i32_0 = arith.constant 0 : i32
    %c0_i32_1 = arith.constant 0 : i32
    return %c0_i32, %c0_i32_0 : i32, i32
  }
  func.func @transform_3(%arg0: i32) -> (i32, i32) {
    %c0_i32 = arith.constant 0 : i32
    %c0_i32_0 = arith.constant 0 : i32
    %c0_i32_1 = arith.constant 0 : i32
    return %c0_i32, %c0_i32_0 : i32, i32
  }
  func.func @transform_4(%arg0: i32) -> (i32, i32) {
    %c0_i32 = arith.constant 0 : i32
    %c0_i32_0 = arith.constant 0 : i32
    %c0_i32_1 = arith.constant 0 : i32
    return %c0_i32, %c0_i32_0 : i32, i32
  }
  func.func @transform_5(%arg0: i32) -> (i32, i32) {
    %c0_i32 = arith.constant 0 : i32
    %c0_i32_0 = arith.constant 0 : i32
    %c0_i32_1 = arith.constant 0 : i32
    return %c0_i32, %c0_i32_0 : i32, i32
  }
  func.func @transform_6(%arg0: i32) -> (i32, i32) {
    %c0_i32 = arith.constant 0 : i32
    %c0_i32_0 = arith.constant 0 : i32
    %c0_i32_1 = arith.constant 0 : i32
    return %c0_i32, %c0_i32_0 : i32, i32
  }
  func.func @transform_7(%arg0: i32) -> (i32, i32) {
    %c0_i32 = arith.constant 0 : i32
    %c0_i32_0 = arith.constant 0 : i32
    %c0_i32_1 = arith.constant 0 : i32
    return %c0_i32, %c0_i32_0 : i32, i32
  }
  func.func @transform_8(%arg0: i32) -> (i32, i32) {
    %c0_i32 = arith.constant 0 : i32
    %c0_i32_0 = arith.constant 0 : i32
    %c0_i32_1 = arith.constant 0 : i32
    return %c0_i32, %c0_i32_0 : i32, i32
  }
  func.func @transform_9(%arg0: i32) -> (i32, i32) {
    %c0_i32 = arith.constant 0 : i32
    %c0_i32_0 = arith.constant 0 : i32
    %c0_i32_1 = arith.constant 0 : i32
    return %c0_i32, %c0_i32_0 : i32, i32
  }
  func.func @transform_10(%arg0: i32) -> (i32, i32) {
    %c0_i32 = arith.constant 0 : i32
    %c0_i32_0 = arith.constant 0 : i32
    %c0_i32_1 = arith.constant 0 : i32
    return %c0_i32, %c0_i32_0 : i32, i32
  }
  func.func @transform_11(%arg0: i32) -> (i32, i32) {
    %c0_i32 = arith.constant 0 : i32
    %c0_i32_0 = arith.constant 0 : i32
    %c0_i32_1 = arith.constant 0 : i32
    return %c0_i32, %c0_i32_0 : i32, i32
  }
  func.func @transform_12(%arg0: i32) -> (i32, i32) {
    %c0_i32 = arith.constant 0 : i32
    %c0_i32_0 = arith.constant 0 : i32
    %c0_i32_1 = arith.constant 0 : i32
    return %c0_i32, %c0_i32_0 : i32, i32
  }
  func.func @transform_13(%arg0: i32) -> (i32, i32) {
    %c0_i32 = arith.constant 0 : i32
    %c0_i32_0 = arith.constant 0 : i32
    %c0_i32_1 = arith.constant 0 : i32
    return %c0_i32, %c0_i32_0 : i32, i32
  }
  func.func @transform_14(%arg0: i32) -> (i32, i32) {
    %c0_i32 = arith.constant 0 : i32
    %c0_i32_0 = arith.constant 0 : i32
    %c0_i32_1 = arith.constant 0 : i32
    return %c0_i32, %c0_i32_0 : i32, i32
  }
}

</mosaic_0001>

<llo_original>
// kernel: _lambda_.5
$region0: #{_lambda_.5}
  #allocation0 [shape = 'u32[]', space=smem, size = 0x4, offset = 0x4, fixed_abs, tag = 'smem constant byte address 0x4 - core index']
  #allocation1 [shape = 'u32[144,128]{1,0:T(1,128)}', space=vmem, size = 0x12000, scoped, tag = 'internal scratch']
  #allocation2 [shape = 'f32[1,1]{1,0:T(1,128)S(1)}', space=vmem, size = 0x200, scoped, tag = 'scoped memory for _lambda_.5']
  %s0 = inlined_call_operand.vmem [shape: f32[12,8], index: 0, kind: input, shape index: {}]
  %s1 = inlined_call_operand.vmem [shape: f32[12,12], index: 1, kind: input, shape index: {}]
  %s2 = inlined_call_operand.vmem [shape: bf16[8,16], index: 2, kind: input, shape index: {}]
  %s3 = inlined_call_operand.vmem [shape: bf16[8,16], index: 3, kind: input, shape index: {}]
  %s4 = inlined_call_operand.vmem [shape: f32[1,16], index: 4, kind: input, shape index: {}]
  %s5 = inlined_call_operand.vmem [shape: bf16[16,16], index: 5, kind: input, shape index: {}]
  %s6 = inlined_call_operand.vmem [shape: bf16[16,16], index: 6, kind: input, shape index: {}]
  %s7 = inlined_call_operand.vmem [shape: f32[1,16], index: 7, kind: input, shape index: {}]
  %s8 = inlined_call_operand.vmem [shape: bf16[16,16], index: 8, kind: input, shape index: {}]
  %s9 = inlined_call_operand.vmem [shape: f32[1,16], index: 9, kind: input, shape index: {}]
  %s10 = inlined_call_operand.vmem [shape: bf16[16,8], index: 10, kind: input, shape index: {}]
  %s11 = inlined_call_operand.vmem [shape: f32[1,8], index: 11, kind: input, shape index: {}]
  %s12 = inlined_call_operand.vmem [shape: bf16[8,1], index: 12, kind: input, shape index: {}]
  %s13 = inlined_call_operand.<no memory space> [shape: f32[1,1], index: 13, kind: input, shape index: {}]
  %s14 = inlined_call_operand.vmem [shape: f32[12,1], index: 14, kind: output, shape index: {}]
  %s15 = sld [smem:[#allocation0]]
  $region66: #{_lambda_.5} parent=0
    _
  %s17 = ssub.s32 1, %s15
  %s18 = scalar_select 0, %s17, %s15
  %v19 = vstv %s13
  %20 = vst [vmem:[#allocation2] sm:$0x1] %v19
  // Predicated region
  $region2: #{_lambda_.5} parent=0 // pred_check
    _
  $region3: #{_lambda_.5} parent=0 // pred_check_branch
    %22 = sbr.rel (0) target = $region5
  $region4: #{_lambda_.5} parent=0 // pred_region
    _
  $region5: #{_lambda_.5} parent=0 // pred_fallthru
    _
  // Predicated region
  $region6: #{_lambda_.5} parent=0 // pred_check
    _
  $region7: #{_lambda_.5} parent=0 // pred_check_branch
    %24 = sbr.rel (0) target = $region9
  $region8: #{_lambda_.5} parent=0 // pred_region
    _
  $region9: #{_lambda_.5} parent=0 // pred_fallthru
    _
  // Predicated region
  $region10: #{_lambda_.5} parent=0 // pred_check
    _
  $region11: #{_lambda_.5} parent=0 // pred_check_branch
    %26 = sbr.rel (0) target = $region13
  $region12: #{_lambda_.5} parent=0 // pred_region
    _
  $region13: #{_lambda_.5} parent=0 // pred_fallthru
    _
  // Predicated region
  $region14: #{_lambda_.5} parent=0 // pred_check
    _
  $region15: #{_lambda_.5} parent=0 // pred_check_branch
    %28 = sbr.rel (0) target = $region17
  $region16: #{_lambda_.5} parent=0 // pred_region
    _
  $region17: #{_lambda_.5} parent=0 // pred_fallthru
    _
  // Predicated region
  $region18: #{_lambda_.5} parent=0 // pred_check
    _
  $region19: #{_lambda_.5} parent=0 // pred_check_branch
    %30 = sbr.rel (0) target = $region21
  $region20: #{_lambda_.5} parent=0 // pred_region
    _
  $region21: #{_lambda_.5} parent=0 // pred_fallthru
    _
  // Predicated region
  $region22: #{_lambda_.5} parent=0 // pred_check
    _
  $region23: #{_lambda_.5} parent=0 // pred_check_branch
    %32 = sbr.rel (0) target = $region25
  $region24: #{_lambda_.5} parent=0 // pred_region
    _
  $region25: #{_lambda_.5} parent=0 // pred_fallthru
    _
  // Predicated region
  $region26: #{_lambda_.5} parent=0 // pred_check
    _
  $region27: #{_lambda_.5} parent=0 // pred_check_branch
    %34 = sbr.rel (0) target = $region29
  $region28: #{_lambda_.5} parent=0 // pred_region
    _
  $region29: #{_lambda_.5} parent=0 // pred_fallthru
    _
  // Predicated region
  $region30: #{_lambda_.5} parent=0 // pred_check
    _
  $region31: #{_lambda_.5} parent=0 // pred_check_branch
    %36 = sbr.rel (0) target = $region33
  $region32: #{_lambda_.5} parent=0 // pred_region
    _
  $region33: #{_lambda_.5} parent=0 // pred_fallthru
    _
  // Predicated region
  $region34: #{_lambda_.5} parent=0 // pred_check
    _
  $region35: #{_lambda_.5} parent=0 // pred_check_branch
    %38 = sbr.rel (0) target = $region37
  $region36: #{_lambda_.5} parent=0 // pred_region
    _
  $region37: #{_lambda_.5} parent=0 // pred_fallthru
    _
  // Predicated region
  $region38: #{_lambda_.5} parent=0 // pred_check
    _
  $region39: #{_lambda_.5} parent=0 // pred_check_branch
    %40 = sbr.rel (0) target = $region41
  $region40: #{_lambda_.5} parent=0 // pred_region
    _
  $region41: #{_lambda_.5} parent=0 // pred_fallthru
    _
  // Predicated region
  $region42: #{_lambda_.5} parent=0 // pred_check
    _
  $region43: #{_lambda_.5} parent=0 // pred_check_branch
    %42 = sbr.rel (0) target = $region45
  $region44: #{_lambda_.5} parent=0 // pred_region
    _
  $region45: #{_lambda_.5} parent=0 // pred_fallthru
    _
  // Predicated region
  $region46: #{_lambda_.5} parent=0 // pred_check
    _
  $region47: #{_lambda_.5} parent=0 // pred_check_branch
    %44 = sbr.rel (0) target = $region49
  $region48: #{_lambda_.5} parent=0 // pred_region
    _
  $region49: #{_lambda_.5} parent=0 // pred_fallthru
    _
  // Predicated region
  $region50: #{_lambda_.5} parent=0 // pred_check
    _
  $region51: #{_lambda_.5} parent=0 // pred_check_branch
    %46 = sbr.rel (0) target = $region53
  $region52: #{_lambda_.5} parent=0 // pred_region
    _
  $region53: #{_lambda_.5} parent=0 // pred_fallthru
    _
  // Predicated region
  $region54: #{_lambda_.5} parent=0 // pred_check
    _
  $region55: #{_lambda_.5} parent=0 // pred_check_branch
    %48 = sbr.rel (0) target = $region57
  $region56: #{_lambda_.5} parent=0 // pred_region
    _
  $region57: #{_lambda_.5} parent=0 // pred_fallthru
    _
  %v50 = vld [vmem:[%s0] sm:$0xff]
  %v51 = vld [vmem:[%s0 + $0x8] sm:$0xf]
  %v52 = vpack.c.bf16 %v51, %v50
  %v53 = vld [vmem:[%s1] sm:$0xff]
  %v54 = vld [vmem:[%s1 + $0x8] sm:$0xf]
  %v55 = vpack.c.bf16 %v54, %v53
  %vm56 = vcmask 97280
  %v58 = vsel %vm56, %v55, 0
  %vm60 = vcmask 1045504
  %v62 = vsel %vm60, %v52, 0
  %64 = vmatprep.subr.bf16.mxu0 0
  %65 = vmatpush1.bf16.msra.mxu0 %v62
  %66 = vmatprep.subr.bf16.mxu0 0
  %67 = vmatpush1.bf16.msra.mxu0 0
  %68 = vmatprep.subr.bf16.mxu0 0
  %69 = vmatpush1.bf16.msra.mxu0 0
  %70 = vmatprep.subr.bf16.mxu0 0
  %71 = vmatpush1.bf16.msra.mxu0 0
  %72 = vmatprep.subr.bf16.mxu0 0
  %73 = vmatpush1.bf16.msra.mxu0 0
  %74 = vmatprep.subr.bf16.mxu0 0
  %75 = vmatpush1.bf16.msra.mxu0 0
  %76 = vmatprep.subr.bf16.mxu0 0
  %77 = vmatpush1.bf16.msra.mxu0 0
  %78 = vmatprep.subr.bf16.mxu0 0
  %79 = vmatpush1.bf16.msra.mxu0 0
  %80 = vmatprep.subr.bf16.mxu0 0
  %81 = vmatpush1.bf16.msra.mxu0 0
  %82 = vmatprep.subr.bf16.mxu0 0
  %83 = vmatpush1.bf16.msra.mxu0 0
  %84 = vmatprep.subr.bf16.mxu0 0
  %85 = vmatpush1.bf16.msra.mxu0 0
  %86 = vmatprep.subr.bf16.mxu0 0
  %87 = vmatpush1.bf16.msra.mxu0 0
  %88 = vmatprep.subr.bf16.mxu0 0
  %89 = vmatpush1.bf16.msra.mxu0 0
  %90 = vmatprep.subr.bf16.mxu0 0
  %91 = vmatpush1.bf16.msra.mxu0 0
  %92 = vmatprep.subr.bf16.mxu0 0
  %93 = vmatpush1.bf16.msra.mxu0 0
  %94 = vmatprep.subr.bf16.mxu0 0
  %95 = vmatpush1.bf16.msra.mxu0 0
  %96 = vmatprep.mubr.bf16.mxu0 0
  %97 = vmatmul.mubr.bf16.gmra.mrb[0].mxu0 %v58
  %v98 = vpop.f32.mrb[0].mxu0
  %v99 = vadd.f32 0.0, %v98
  %v100 = vpop.f32.mrb[0].mxu0
  %v101 = vpop.f32.mrb[0].mxu0
  %v102 = vadd.f32 0.0, %v101
  %v103 = vpop.f32.mrb[0].mxu0
  %104 = vdwg.mxu0
  %v105 = vpack.c.bf16 %v102, %v99
  %v106 = vld [vmem:[%s2] sm:$0xf]
  %v107 = vld [vmem:[%s3] sm:$0xf]
  %vm108 = vcmask 64512
  %v110 = vsel %vm108, %v105, 0
  %vm112 = vcmask 1043456
  %v114 = vsel %vm112, %v107, 0
  %116 = vmatprep.subr.bf16.mxu0 0
  %117 = vmatpush1.bf16.msra.mxu0 %v114
  %118 = vmatprep.subr.bf16.mxu0 0
  %119 = vmatpush1.bf16.msra.mxu0 0
  %120 = vmatprep.subr.bf16.mxu0 0
  %121 = vmatpush1.bf16.msra.mxu0 0
  %122 = vmatprep.subr.bf16.mxu0 0
  %123 = vmatpush1.bf16.msra.mxu0 0
  %124 = vmatprep.subr.bf16.mxu0 0
  %125 = vmatpush1.bf16.msra.mxu0 0
  %126 = vmatprep.subr.bf16.mxu0 0
  %127 = vmatpush1.bf16.msra.mxu0 0
  %128 = vmatprep.subr.bf16.mxu0 0
  %129 = vmatpush1.bf16.msra.mxu0 0
  %130 = vmatprep.subr.bf16.mxu0 0
  %131 = vmatpush1.bf16.msra.mxu0 0
  %132 = vmatprep.subr.bf16.mxu0 0
  %133 = vmatpush1.bf16.msra.mxu0 0
  %134 = vmatprep.subr.bf16.mxu0 0
  %135 = vmatpush1.bf16.msra.mxu0 0
  %136 = vmatprep.subr.bf16.mxu0 0
  %137 = vmatpush1.bf16.msra.mxu0 0
  %138 = vmatprep.subr.bf16.mxu0 0
  %139 = vmatpush1.bf16.msra.mxu0 0
  %140 = vmatprep.subr.bf16.mxu0 0
  %141 = vmatpush1.bf16.msra.mxu0 0
  %142 = vmatprep.subr.bf16.mxu0 0
  %143 = vmatpush1.bf16.msra.mxu0 0
  %144 = vmatprep.subr.bf16.mxu0 0
  %145 = vmatpush1.bf16.msra.mxu0 0
  %146 = vmatprep.subr.bf16.mxu0 0
  %147 = vmatpush1.bf16.msra.mxu0 0
  %148 = vmatprep.mubr.bf16.mxu0 0
  %149 = vmatmul.mubr.bf16.gmra.mrb[0].mxu0 %v110
  %v150 = vpop.f32.mrb[0].mxu0
  %v151 = vadd.f32 0.0, %v150
  %v152 = vpop.f32.mrb[0].mxu0
  %v153 = vpop.f32.mrb[0].mxu0
  %v154 = vadd.f32 0.0, %v153
  %v155 = vpop.f32.mrb[0].mxu0
  %156 = vdwg.mxu0
  %v157 = vsel %vm108, %v52, 0
  %v160 = vsel %vm112, %v106, 0
  %162 = vmatprep.subr.bf16.mxu0 0
  %163 = vmatpush1.bf16.msra.mxu0 %v160
  %164 = vmatprep.subr.bf16.mxu0 0
  %165 = vmatpush1.bf16.msra.mxu0 0
  %166 = vmatprep.subr.bf16.mxu0 0
  %167 = vmatpush1.bf16.msra.mxu0 0
  %168 = vmatprep.subr.bf16.mxu0 0
  %169 = vmatpush1.bf16.msra.mxu0 0
  %170 = vmatprep.subr.bf16.mxu0 0
  %171 = vmatpush1.bf16.msra.mxu0 0
  %172 = vmatprep.subr.bf16.mxu0 0
  %173 = vmatpush1.bf16.msra.mxu0 0
  %174 = vmatprep.subr.bf16.mxu0 0
  %175 = vmatpush1.bf16.msra.mxu0 0
  %176 = vmatprep.subr.bf16.mxu0 0
  %177 = vmatpush1.bf16.msra.mxu0 0
  %178 = vmatprep.subr.bf16.mxu0 0
  %179 = vmatpush1.bf16.msra.mxu0 0
  %180 = vmatprep.subr.bf16.mxu0 0
  %181 = vmatpush1.bf16.msra.mxu0 0
  %182 = vmatprep.subr.bf16.mxu0 0
  %183 = vmatpush1.bf16.msra.mxu0 0
  %184 = vmatprep.subr.bf16.mxu0 0
  %185 = vmatpush1.bf16.msra.mxu0 0
  %186 = vmatprep.subr.bf16.mxu0 0
  %187 = vmatpush1.bf16.msra.mxu0 0
  %188 = vmatprep.subr.bf16.mxu0 0
  %189 = vmatpush1.bf16.msra.mxu0 0
  %190 = vmatprep.subr.bf16.mxu0 0
  %191 = vmatpush1.bf16.msra.mxu0 0
  %192 = vmatprep.subr.bf16.mxu0 0
  %193 = vmatpush1.bf16.msra.mxu0 0
  %194 = vmatprep.mubr.bf16.mxu0 0
  %195 = vmatmul.mubr.bf16.gmra.mrb[0].mxu0 %v157
  %v196 = vpop.f32.mrb[0].mxu0
  %v197 = vadd.f32 %v151, %v196
  %v198 = vpop.f32.mrb[0].mxu0
  %v199 = vpop.f32.mrb[0].mxu0
  %v200 = vadd.f32 %v154, %v199
  %v201 = vpop.f32.mrb[0].mxu0
  %202 = vdwg.mxu0
  %v203 = vld [vmem:[%s4] sm:$0x1]
  %v205 = vlaneseq
  %v206 = vshrl.u32 %v205, 7
  %v207 = vsub.s32 0, %v206
  %v208 = vrot.slane %v203, %v207
  %v210 = vadd.f32 %v197, %v208
  %v211 = vadd.f32 %v200, %v208
  %v212 = vmax.f32 %v210, 0.0
  %v213 = vmax.f32 %v211, 0.0
  %v214 = vpack.c.bf16 %v213, %v212
  %v216 = vsel %vm60, %v214, 0
  %218 = vmatprep.subr.bf16.mxu0 0
  %219 = vmatpush1.bf16.msra.mxu0 %v216
  %220 = vmatprep.subr.bf16.mxu0 0
  %221 = vmatpush1.bf16.msra.mxu0 0
  %222 = vmatprep.subr.bf16.mxu0 0
  %223 = vmatpush1.bf16.msra.mxu0 0
  %224 = vmatprep.subr.bf16.mxu0 0
  %225 = vmatpush1.bf16.msra.mxu0 0
  %226 = vmatprep.subr.bf16.mxu0 0
  %227 = vmatpush1.bf16.msra.mxu0 0
  %228 = vmatprep.subr.bf16.mxu0 0
  %229 = vmatpush1.bf16.msra.mxu0 0
  %230 = vmatprep.subr.bf16.mxu0 0
  %231 = vmatpush1.bf16.msra.mxu0 0
  %232 = vmatprep.subr.bf16.mxu0 0
  %233 = vmatpush1.bf16.msra.mxu0 0
  %234 = vmatprep.subr.bf16.mxu0 0
  %235 = vmatpush1.bf16.msra.mxu0 0
  %236 = vmatprep.subr.bf16.mxu0 0
  %237 = vmatpush1.bf16.msra.mxu0 0
  %238 = vmatprep.subr.bf16.mxu0 0
  %239 = vmatpush1.bf16.msra.mxu0 0
  %240 = vmatprep.subr.bf16.mxu0 0
  %241 = vmatpush1.bf16.msra.mxu0 0
  %242 = vmatprep.subr.bf16.mxu0 0
  %243 = vmatpush1.bf16.msra.mxu0 0
  %244 = vmatprep.subr.bf16.mxu0 0
  %245 = vmatpush1.bf16.msra.mxu0 0
  %246 = vmatprep.subr.bf16.mxu0 0
  %247 = vmatpush1.bf16.msra.mxu0 0
  %248 = vmatprep.subr.bf16.mxu0 0
  %249 = vmatpush1.bf16.msra.mxu0 0
  %250 = vmatprep.mubr.bf16.mxu0 0
  %251 = vmatmul.mubr.bf16.gmra.mrb[0].mxu0 %v58
  %v252 = vpop.f32.mrb[0].mxu0
  %v253 = vadd.f32 0.0, %v252
  %v254 = vpop.f32.mrb[0].mxu0
  %v255 = vpop.f32.mrb[0].mxu0
  %v256 = vadd.f32 0.0, %v255
  %v257 = vpop.f32.mrb[0].mxu0
  %258 = vdwg.mxu0
  %v259 = vpack.c.bf16 %v256, %v253
  %v260 = vld [vmem:[%s5] sm:$0xf]
  %v261 = vld [vmem:[%s5 + $0x4] sm:$0xf]
  %v262 = vld [vmem:[%s6] sm:$0xf]
  %v263 = vld [vmem:[%s6 + $0x4] sm:$0xf]
  %v266 = vunpack.c.l.b16 %v262
  %v267 = vunpack.c.l.b16 %v263
  %v268 = vpack.c.b16 %v267, %v266
  %vm270 = vcmask 130048
  %v272 = vsel %vm270, %v259, 0
  %274 = vmatprep.subr.bf16.mxu0 0
  %275 = vmatpush1.bf16.msra.mxu0 %v268
  %276 = vmatprep.subr.bf16.mxu0 0
  %277 = vmatpush1.bf16.msra.mxu0 0
  %278 = vmatprep.subr.bf16.mxu0 0
  %279 = vmatpush1.bf16.msra.mxu0 0
  %280 = vmatprep.subr.bf16.mxu0 0
  %281 = vmatpush1.bf16.msra.mxu0 0
  %282 = vmatprep.subr.bf16.mxu0 0
  %283 = vmatpush1.bf16.msra.mxu0 0
  %284 = vmatprep.subr.bf16.mxu0 0
  %285 = vmatpush1.bf16.msra.mxu0 0
  %286 = vmatprep.subr.bf16.mxu0 0
  %287 = vmatpush1.bf16.msra.mxu0 0
  %288 = vmatprep.subr.bf16.mxu0 0
  %289 = vmatpush1.bf16.msra.mxu0 0
  %290 = vmatprep.subr.bf16.mxu0 0
  %291 = vmatpush1.bf16.msra.mxu0 0
  %292 = vmatprep.subr.bf16.mxu0 0
  %293 = vmatpush1.bf16.msra.mxu0 0
  %294 = vmatprep.subr.bf16.mxu0 0
  %295 = vmatpush1.bf16.msra.mxu0 0
  %296 = vmatprep.subr.bf16.mxu0 0
  %297 = vmatpush1.bf16.msra.mxu0 0
  %298 = vmatprep.subr.bf16.mxu0 0
  %299 = vmatpush1.bf16.msra.mxu0 0
  %300 = vmatprep.subr.bf16.mxu0 0
  %301 = vmatpush1.bf16.msra.mxu0 0
  %302 = vmatprep.subr.bf16.mxu0 0
  %303 = vmatpush1.bf16.msra.mxu0 0
  %304 = vmatprep.subr.bf16.mxu0 0
  %305 = vmatpush1.bf16.msra.mxu0 0
  %306 = vmatprep.mubr.bf16.mxu0 0
  %307 = vmatmul.mubr.bf16.gmra.mrb[0].mxu0 %v272
  %v308 = vpop.f32.mrb[0].mxu0
  %v309 = vadd.f32 0.0, %v308
  %v310 = vpop.f32.mrb[0].mxu0
  %v311 = vpop.f32.mrb[0].mxu0
  %v312 = vadd.f32 0.0, %v311
  %v313 = vpop.f32.mrb[0].mxu0
  %314 = vdwg.mxu0
  %v317 = vunpack.c.l.b16 %v260
  %v318 = vunpack.c.l.b16 %v261
  %v319 = vpack.c.b16 %v318, %v317
  %v321 = vsel %vm270, %v214, 0
  %323 = vmatprep.subr.bf16.mxu0 0
  %324 = vmatpush1.bf16.msra.mxu0 %v319
  %325 = vmatprep.subr.bf16.mxu0 0
  %326 = vmatpush1.bf16.msra.mxu0 0
  %327 = vmatprep.subr.bf16.mxu0 0
  %328 = vmatpush1.bf16.msra.mxu0 0
  %329 = vmatprep.subr.bf16.mxu0 0
  %330 = vmatpush1.bf16.msra.mxu0 0
  %331 = vmatprep.subr.bf16.mxu0 0
  %332 = vmatpush1.bf16.msra.mxu0 0
  %333 = vmatprep.subr.bf16.mxu0 0
  %334 = vmatpush1.bf16.msra.mxu0 0
  %335 = vmatprep.subr.bf16.mxu0 0
  %336 = vmatpush1.bf16.msra.mxu0 0
  %337 = vmatprep.subr.bf16.mxu0 0
  %338 = vmatpush1.bf16.msra.mxu0 0
  %339 = vmatprep.subr.bf16.mxu0 0
  %340 = vmatpush1.bf16.msra.mxu0 0
  %341 = vmatprep.subr.bf16.mxu0 0
  %342 = vmatpush1.bf16.msra.mxu0 0
  %343 = vmatprep.subr.bf16.mxu0 0
  %344 = vmatpush1.bf16.msra.mxu0 0
  %345 = vmatprep.subr.bf16.mxu0 0
  %346 = vmatpush1.bf16.msra.mxu0 0
  %347 = vmatprep.subr.bf16.mxu0 0
  %348 = vmatpush1.bf16.msra.mxu0 0
  %349 = vmatprep.subr.bf16.mxu0 0
  %350 = vmatpush1.bf16.msra.mxu0 0
  %351 = vmatprep.subr.bf16.mxu0 0
  %352 = vmatpush1.bf16.msra.mxu0 0
  %353 = vmatprep.subr.bf16.mxu0 0
  %354 = vmatpush1.bf16.msra.mxu0 0
  %355 = vmatprep.mubr.bf16.mxu0 0
  %356 = vmatmul.mubr.bf16.gmra.mrb[0].mxu0 %v321
  %v357 = vpop.f32.mrb[0].mxu0
  %v358 = vadd.f32 %v309, %v357
  %v359 = vpop.f32.mrb[0].mxu0
  %v360 = vpop.f32.mrb[0].mxu0
  %v361 = vadd.f32 %v312, %v360
  %v362 = vpop.f32.mrb[0].mxu0
  %363 = vdwg.mxu0
  %v364 = vld [vmem:[%s7] sm:$0x1]
  %v366 = vlaneseq
  %v367 = vshrl.u32 %v366, 7
  %v368 = vsub.s32 0, %v367
  %v369 = vrot.slane %v364, %v368
  %v371 = vadd.f32 %v358, %v369
  %v372 = vadd.f32 %v361, %v369
  %v373 = vpack.c.bf16 %v372, %v371
  %v374 = vld [vmem:[%s8] sm:$0xf]
  %v375 = vld [vmem:[%s8 + $0x4] sm:$0xf]
  %v376 = vld [vmem:[%s9] sm:$0x1]
  %v378 = vlaneseq
  %v379 = vshrl.u32 %v378, 7
  %v380 = vsub.s32 0, %v379
  %v381 = vrot.slane %v376, %v380
  %v385 = vunpack.c.l.b16 %v374
  %v386 = vunpack.c.l.b16 %v375
  %v387 = vpack.c.b16 %v386, %v385
  %v390 = vsel %vm270, %v373, 0
  %392 = vmatprep.subr.bf16.mxu0 0
  %393 = vmatpush1.bf16.msra.mxu0 %v387
  %394 = vmatprep.subr.bf16.mxu0 0
  %395 = vmatpush1.bf16.msra.mxu0 0
  %396 = vmatprep.subr.bf16.mxu0 0
  %397 = vmatpush1.bf16.msra.mxu0 0
  %398 = vmatprep.subr.bf16.mxu0 0
  %399 = vmatpush1.bf16.msra.mxu0 0
  %400 = vmatprep.subr.bf16.mxu0 0
  %401 = vmatpush1.bf16.msra.mxu0 0
  %402 = vmatprep.subr.bf16.mxu0 0
  %403 = vmatpush1.bf16.msra.mxu0 0
  %404 = vmatprep.subr.bf16.mxu0 0
  %405 = vmatpush1.bf16.msra.mxu0 0
  %406 = vmatprep.subr.bf16.mxu0 0
  %407 = vmatpush1.bf16.msra.mxu0 0
  %408 = vmatprep.subr.bf16.mxu0 0
  %409 = vmatpush1.bf16.msra.mxu0 0
  %410 = vmatprep.subr.bf16.mxu0 0
  %411 = vmatpush1.bf16.msra.mxu0 0
  %412 = vmatprep.subr.bf16.mxu0 0
  %413 = vmatpush1.bf16.msra.mxu0 0
  %414 = vmatprep.subr.bf16.mxu0 0
  %415 = vmatpush1.bf16.msra.mxu0 0
  %416 = vmatprep.subr.bf16.mxu0 0
  %417 = vmatpush1.bf16.msra.mxu0 0
  %418 = vmatprep.subr.bf16.mxu0 0
  %419 = vmatpush1.bf16.msra.mxu0 0
  %420 = vmatprep.subr.bf16.mxu0 0
  %421 = vmatpush1.bf16.msra.mxu0 0
  %422 = vmatprep.subr.bf16.mxu0 0
  %423 = vmatpush1.bf16.msra.mxu0 0
  %424 = vmatprep.mubr.bf16.mxu0 0
  %425 = vmatmul.mubr.bf16.gmra.mrb[0].mxu0 %v390
  %v426 = vpop.f32.mrb[0].mxu0
  %v427 = vadd.f32 %v381, %v426
  %v428 = vpop.f32.mrb[0].mxu0
  %v429 = vpop.f32.mrb[0].mxu0
  %v430 = vadd.f32 %v381, %v429
  %v431 = vpop.f32.mrb[0].mxu0
  %432 = vdwg.mxu0
  %v433 = vmax.f32 %v427, 0.0
  %v434 = vmax.f32 %v430, 0.0
  %v435 = vpack.c.bf16 %v434, %v433
  %v436 = vld [vmem:[%s10] sm:$0xf]
  %v437 = vld [vmem:[%s10 + $0x4] sm:$0xf]
  %v438 = vld [vmem:[%s11] sm:$0x1]
  %v440 = vlaneseq
  %v441 = vshrl.u32 %v440, 7
  %v442 = vsub.s32 0, %v441
  %v443 = vrot.slane %v438, %v442
  %v447 = vunpack.c.l.b16 %v436
  %v448 = vunpack.c.l.b16 %v437
  %v449 = vpack.c.b16 %v448, %v447
  %v452 = vsel %vm270, %v435, 0
  %454 = vmatprep.subr.bf16.mxu0 0
  %455 = vmatpush1.bf16.msra.mxu0 %v449
  %456 = vmatprep.subr.bf16.mxu0 0
  %457 = vmatpush1.bf16.msra.mxu0 0
  %458 = vmatprep.subr.bf16.mxu0 0
  %459 = vmatpush1.bf16.msra.mxu0 0
  %460 = vmatprep.subr.bf16.mxu0 0
  %461 = vmatpush1.bf16.msra.mxu0 0
  %462 = vmatprep.subr.bf16.mxu0 0
  %463 = vmatpush1.bf16.msra.mxu0 0
  %464 = vmatprep.subr.bf16.mxu0 0
  %465 = vmatpush1.bf16.msra.mxu0 0
  %466 = vmatprep.subr.bf16.mxu0 0
  %467 = vmatpush1.bf16.msra.mxu0 0
  %468 = vmatprep.subr.bf16.mxu0 0
  %469 = vmatpush1.bf16.msra.mxu0 0
  %470 = vmatprep.subr.bf16.mxu0 0
  %471 = vmatpush1.bf16.msra.mxu0 0
  %472 = vmatprep.subr.bf16.mxu0 0
  %473 = vmatpush1.bf16.msra.mxu0 0
  %474 = vmatprep.subr.bf16.mxu0 0
  %475 = vmatpush1.bf16.msra.mxu0 0
  %476 = vmatprep.subr.bf16.mxu0 0
  %477 = vmatpush1.bf16.msra.mxu0 0
  %478 = vmatprep.subr.bf16.mxu0 0
  %479 = vmatpush1.bf16.msra.mxu0 0
  %480 = vmatprep.subr.bf16.mxu0 0
  %481 = vmatpush1.bf16.msra.mxu0 0
  %482 = vmatprep.subr.bf16.mxu0 0
  %483 = vmatpush1.bf16.msra.mxu0 0
  %484 = vmatprep.subr.bf16.mxu0 0
  %485 = vmatpush1.bf16.msra.mxu0 0
  %486 = vmatprep.mubr.bf16.mxu0 0
  %487 = vmatmul.mubr.bf16.gmra.mrb[0].mxu0 %v452
  %v488 = vpop.f32.mrb[0].mxu0
  %v489 = vadd.f32 %v443, %v488
  %v490 = vpop.f32.mrb[0].mxu0
  %v491 = vpop.f32.mrb[0].mxu0
  %v492 = vadd.f32 %v443, %v491
  %v493 = vpop.f32.mrb[0].mxu0
  %494 = vdwg.mxu0
  %v495 = vmax.f32 %v489, 0.0
  %v496 = vmax.f32 %v492, 0.0
  %v497 = vpack.c.bf16 %v496, %v495
  %v498 = vld [vmem:[%s12] sm:$0xf]
  %v499 = vld [vmem:[#allocation2] sm:$0x1]
  %v501 = vlaneseq
  %v502 = vshrl.u32 %v501, 7
  %v503 = vsub.s32 0, %v502
  %v504 = vrot.slane %v499, %v503
  %v507 = vsel %vm108, %v497, 0
  %v510 = vsel %vm112, %v498, 0
  %512 = vmatprep.subr.bf16.mxu0 0
  %513 = vmatpush1.bf16.msra.mxu0 %v510
  %514 = vmatprep.subr.bf16.mxu0 0
  %515 = vmatpush1.bf16.msra.mxu0 0
  %516 = vmatprep.subr.bf16.mxu0 0
  %517 = vmatpush1.bf16.msra.mxu0 0
  %518 = vmatprep.subr.bf16.mxu0 0
  %519 = vmatpush1.bf16.msra.mxu0 0
  %520 = vmatprep.subr.bf16.mxu0 0
  %521 = vmatpush1.bf16.msra.mxu0 0
  %522 = vmatprep.subr.bf16.mxu0 0
  %523 = vmatpush1.bf16.msra.mxu0 0
  %524 = vmatprep.subr.bf16.mxu0 0
  %525 = vmatpush1.bf16.msra.mxu0 0
  %526 = vmatprep.subr.bf16.mxu0 0
  %527 = vmatpush1.bf16.msra.mxu0 0
  %528 = vmatprep.subr.bf16.mxu0 0
  %529 = vmatpush1.bf16.msra.mxu0 0
  %530 = vmatprep.subr.bf16.mxu0 0
  %531 = vmatpush1.bf16.msra.mxu0 0
  %532 = vmatprep.subr.bf16.mxu0 0
  %533 = vmatpush1.bf16.msra.mxu0 0
  %534 = vmatprep.subr.bf16.mxu0 0
  %535 = vmatpush1.bf16.msra.mxu0 0
  %536 = vmatprep.subr.bf16.mxu0 0
  %537 = vmatpush1.bf16.msra.mxu0 0
  %538 = vmatprep.subr.bf16.mxu0 0
  %539 = vmatpush1.bf16.msra.mxu0 0
  %540 = vmatprep.subr.bf16.mxu0 0
  %541 = vmatpush1.bf16.msra.mxu0 0
  %542 = vmatprep.subr.bf16.mxu0 0
  %543 = vmatpush1.bf16.msra.mxu0 0
  %544 = vmatprep.mubr.bf16.mxu0 0
  %545 = vmatmul.mubr.bf16.gmra.mrb[0].mxu0 %v507
  %v546 = vpop.f32.mrb[0].mxu0
  %v547 = vadd.f32 %v504, %v546
  %v548 = vpop.f32.mrb[0].mxu0
  %v549 = vpop.f32.mrb[0].mxu0
  %v550 = vadd.f32 %v504, %v549
  %v551 = vpop.f32.mrb[0].mxu0
  %552 = vdwg.mxu0
  %vm553 = vcmask 7168
  %554 = vst.msk [vmem:[%s14] sm:$0xff] %vm553, %v547
  %vm555 = vcmask 3072
  %556 = vst.msk [vmem:[%s14 + $0x8] sm:$0xf] %vm555, %v550
  // Predicated region
  $region58: #{_lambda_.5} parent=0 // pred_check
    _
  $region59: #{_lambda_.5} parent=0 // pred_check_branch
    %558 = sbr.rel (0) target = $region61
  $region60: #{_lambda_.5} parent=0 // pred_region
    _
  $region61: #{_lambda_.5} parent=0 // pred_fallthru
    _
  // Predicated region
  $region62: #{_lambda_.5} parent=0 // pred_check
    _
  $region63: #{_lambda_.5} parent=0 // pred_check_branch
    %560 = sbr.rel (0) target = $region65
  $region64: #{_lambda_.5} parent=0 // pred_region
    _
  $region65: #{_lambda_.5} parent=0 // pred_fallthru
    _

// kernel: _lambda_.4
$region0: #{_lambda_.4}
  #allocation0 [shape = 'u32[]', space=smem, size = 0x4, offset = 0x4, fixed_abs, tag = 'smem constant byte address 0x4 - core index']
  #allocation1 [shape = 'u32[144,128]{1,0:T(1,128)}', space=vmem, size = 0x12000, scoped, tag = 'internal scratch']
  #allocation2 [shape = 'f32[1,1]{1,0:T(1,128)S(1)}', space=vmem, size = 0x200, scoped, tag = 'scoped memory for _lambda_.4']
  %s0 = inlined_call_operand.vmem [shape: f32[4,128], index: 0, kind: input, shape index: {}]
  %s1 = inlined_call_operand.vmem [shape: bf16[128,32], index: 1, kind: input, shape index: {}]
  %s2 = inlined_call_operand.vmem [shape: f32[1,32], index: 2, kind: input, shape index: {}]
  %s3 = inlined_call_operand.vmem [shape: bf16[32,16], index: 3, kind: input, shape index: {}]
  %s4 = inlined_call_operand.vmem [shape: f32[1,16], index: 4, kind: input, shape index: {}]
  %s5 = inlined_call_operand.vmem [shape: bf16[16,8], index: 5, kind: input, shape index: {}]
  %s6 = inlined_call_operand.vmem [shape: f32[1,8], index: 6, kind: input, shape index: {}]
  %s7 = inlined_call_operand.vmem [shape: bf16[8,1], index: 7, kind: input, shape index: {}]
  %s8 = inlined_call_operand.<no memory space> [shape: f32[1,1], index: 8, kind: input, shape index: {}]
  %s9 = inlined_call_operand.vmem [shape: f32[4,1], index: 9, kind: output, shape index: {}]
  %s10 = sld [smem:[#allocation0]]
  $region46: #{_lambda_.4} parent=0
    _
  %s12 = ssub.s32 1, %s10
  %s13 = scalar_select 0, %s12, %s10
  %v14 = vstv %s8
  %15 = vst [vmem:[#allocation2] sm:$0x1] %v14
  // Predicated region
  $region2: #{_lambda_.4} parent=0 // pred_check
    _
  $region3: #{_lambda_.4} parent=0 // pred_check_branch
    %17 = sbr.rel (0) target = $region5
  $region4: #{_lambda_.4} parent=0 // pred_region
    _
  $region5: #{_lambda_.4} parent=0 // pred_fallthru
    _
  // Predicated region
  $region6: #{_lambda_.4} parent=0 // pred_check
    _
  $region7: #{_lambda_.4} parent=0 // pred_check_branch
    %19 = sbr.rel (0) target = $region9
  $region8: #{_lambda_.4} parent=0 // pred_region
    _
  $region9: #{_lambda_.4} parent=0 // pred_fallthru
    _
  // Predicated region
  $region10: #{_lambda_.4} parent=0 // pred_check
    _
  $region11: #{_lambda_.4} parent=0 // pred_check_branch
    %21 = sbr.rel (0) target = $region13
  $region12: #{_lambda_.4} parent=0 // pred_region
    _
  $region13: #{_lambda_.4} parent=0 // pred_fallthru
    _
  // Predicated region
  $region14: #{_lambda_.4} parent=0 // pred_check
    _
  $region15: #{_lambda_.4} parent=0 // pred_check_branch
    %23 = sbr.rel (0) target = $region17
  $region16: #{_lambda_.4} parent=0 // pred_region
    _
  $region17: #{_lambda_.4} parent=0 // pred_fallthru
    _
  // Predicated region
  $region18: #{_lambda_.4} parent=0 // pred_check
    _
  $region19: #{_lambda_.4} parent=0 // pred_check_branch
    %25 = sbr.rel (0) target = $region21
  $region20: #{_lambda_.4} parent=0 // pred_region
    _
  $region21: #{_lambda_.4} parent=0 // pred_fallthru
    _
  // Predicated region
  $region22: #{_lambda_.4} parent=0 // pred_check
    _
  $region23: #{_lambda_.4} parent=0 // pred_check_branch
    %27 = sbr.rel (0) target = $region25
  $region24: #{_lambda_.4} parent=0 // pred_region
    _
  $region25: #{_lambda_.4} parent=0 // pred_fallthru
    _
  // Predicated region
  $region26: #{_lambda_.4} parent=0 // pred_check
    _
  $region27: #{_lambda_.4} parent=0 // pred_check_branch
    %29 = sbr.rel (0) target = $region29
  $region28: #{_lambda_.4} parent=0 // pred_region
    _
  $region29: #{_lambda_.4} parent=0 // pred_fallthru
    _
  // Predicated region
  $region30: #{_lambda_.4} parent=0 // pred_check
    _
  $region31: #{_lambda_.4} parent=0 // pred_check_branch
    %31 = sbr.rel (0) target = $region33
  $region32: #{_lambda_.4} parent=0 // pred_region
    _
  $region33: #{_lambda_.4} parent=0 // pred_fallthru
    _
  // Predicated region
  $region34: #{_lambda_.4} parent=0 // pred_check
    _
  $region35: #{_lambda_.4} parent=0 // pred_check_branch
    %33 = sbr.rel (0) target = $region37
  $region36: #{_lambda_.4} parent=0 // pred_region
    _
  $region37: #{_lambda_.4} parent=0 // pred_fallthru
    _
  %v35 = vld [vmem:[%s0] sm:$0xf]
  %v36 = vpack.c.bf16 %v35, %v35
  %v37 = vld [vmem:[%s1] sm:$0xf]
  %v38 = vld [vmem:[%s1 + $0x4] sm:$0xf]
  %v39 = vld [vmem:[%s1 + $0x8] sm:$0xf]
  %v40 = vld [vmem:[%s1 + $0xc] sm:$0xf]
  %v41 = vld [vmem:[%s1 + $0x10] sm:$0xf]
  %v42 = vld [vmem:[%s1 + $0x14] sm:$0xf]
  %v43 = vld [vmem:[%s1 + $0x18] sm:$0xf]
  %v44 = vld [vmem:[%s1 + $0x1c] sm:$0xf]
  %v45 = vld [vmem:[%s1 + $0x20] sm:$0xf]
  %v46 = vld [vmem:[%s1 + $0x24] sm:$0xf]
  %v47 = vld [vmem:[%s1 + $0x28] sm:$0xf]
  %v48 = vld [vmem:[%s1 + $0x2c] sm:$0xf]
  %v49 = vld [vmem:[%s1 + $0x30] sm:$0xf]
  %v50 = vld [vmem:[%s1 + $0x34] sm:$0xf]
  %v51 = vld [vmem:[%s1 + $0x38] sm:$0xf]
  %v52 = vld [vmem:[%s1 + $0x3c] sm:$0xf]
  %v53 = vld [vmem:[%s2] sm:$0x1]
  %v55 = vlaneseq
  %v56 = vshrl.u32 %v55, 7
  %v57 = vsub.s32 0, %v56
  %v58 = vrot.slane %v53, %v57
  %v76 = vunpack.c.l.b16 %v37
  %v77 = vunpack.c.l.b16 %v38
  %v78 = vunpack.c.l.b16 %v39
  %v79 = vunpack.c.l.b16 %v40
  %v80 = vunpack.c.l.b16 %v41
  %v81 = vunpack.c.l.b16 %v42
  %v82 = vunpack.c.l.b16 %v43
  %v83 = vunpack.c.l.b16 %v44
  %v84 = vunpack.c.l.b16 %v45
  %v85 = vunpack.c.l.b16 %v46
  %v86 = vunpack.c.l.b16 %v47
  %v87 = vunpack.c.l.b16 %v48
  %v88 = vunpack.c.l.b16 %v49
  %v89 = vunpack.c.l.b16 %v50
  %v90 = vunpack.c.l.b16 %v51
  %v91 = vunpack.c.l.b16 %v52
  %v92 = vpack.c.b16 %v77, %v76
  %v93 = vpack.c.b16 %v79, %v78
  %v94 = vpack.c.b16 %v81, %v80
  %v95 = vpack.c.b16 %v83, %v82
  %v96 = vpack.c.b16 %v85, %v84
  %v97 = vpack.c.b16 %v87, %v86
  %v98 = vpack.c.b16 %v89, %v88
  %v99 = vpack.c.b16 %v91, %v90
  %108 = vmatprep.subr.bf16.mxu0 0
  %109 = vmatpush1.bf16.msra.mxu0 %v92
  %110 = vmatprep.subr.bf16.mxu0 0
  %111 = vmatpush1.bf16.msra.mxu0 %v93
  %112 = vmatprep.subr.bf16.mxu0 0
  %113 = vmatpush1.bf16.msra.mxu0 %v94
  %114 = vmatprep.subr.bf16.mxu0 0
  %115 = vmatpush1.bf16.msra.mxu0 %v95
  %116 = vmatprep.subr.bf16.mxu0 0
  %117 = vmatpush1.bf16.msra.mxu0 %v96
  %118 = vmatprep.subr.bf16.mxu0 0
  %119 = vmatpush1.bf16.msra.mxu0 %v97
  %120 = vmatprep.subr.bf16.mxu0 0
  %121 = vmatpush1.bf16.msra.mxu0 %v98
  %122 = vmatprep.subr.bf16.mxu0 0
  %123 = vmatpush1.bf16.msra.mxu0 %v99
  %124 = vmatprep.subr.bf16.mxu0 0
  %125 = vmatpush1.bf16.msra.mxu0 0
  %126 = vmatprep.subr.bf16.mxu0 0
  %127 = vmatpush1.bf16.msra.mxu0 0
  %128 = vmatprep.subr.bf16.mxu0 0
  %129 = vmatpush1.bf16.msra.mxu0 0
  %130 = vmatprep.subr.bf16.mxu0 0
  %131 = vmatpush1.bf16.msra.mxu0 0
  %132 = vmatprep.subr.bf16.mxu0 0
  %133 = vmatpush1.bf16.msra.mxu0 0
  %134 = vmatprep.subr.bf16.mxu0 0
  %135 = vmatpush1.bf16.msra.mxu0 0
  %136 = vmatprep.subr.bf16.mxu0 0
  %137 = vmatpush1.bf16.msra.mxu0 0
  %138 = vmatprep.subr.bf16.mxu0 0
  %139 = vmatpush1.bf16.msra.mxu0 0
  %140 = vmatprep.mubr.bf16.mxu0 0
  %141 = vmatmul.mubr.bf16.gmra.mrb[0].mxu0 %v36
  %v142 = vpop.f32.mrb[0].mxu0
  %v143 = vadd.f32 %v58, %v142
  %v144 = vpop.f32.mrb[0].mxu0
  %v145 = vpop.f32.mrb[0].mxu0
  %v146 = vpop.f32.mrb[0].mxu0
  %147 = vdwg.mxu0
  %v148 = vmax.f32 %v143, 0.0
  %v149 = vpack.c.bf16 %v148, %v148
  %v150 = vld [vmem:[%s3] sm:$0xf]
  %v151 = vld [vmem:[%s3 + $0x4] sm:$0xf]
  %v152 = vld [vmem:[%s3 + $0x8] sm:$0xf]
  %v153 = vld [vmem:[%s3 + $0xc] sm:$0xf]
  %v154 = vld [vmem:[%s4] sm:$0x1]
  %v156 = vlaneseq
  %v157 = vshrl.u32 %v156, 7
  %v158 = vsub.s32 0, %v157
  %v159 = vrot.slane %v154, %v158
  %v165 = vunpack.c.l.b16 %v150
  %v166 = vunpack.c.l.b16 %v151
  %v167 = vunpack.c.l.b16 %v152
  %v168 = vunpack.c.l.b16 %v153
  %v169 = vpack.c.b16 %v166, %v165
  %v170 = vpack.c.b16 %v168, %v167
  %vm173 = vcmask 261120
  %v175 = vsel %vm173, %v149, 0
  %177 = vmatprep.subr.bf16.mxu0 0
  %178 = vmatpush1.bf16.msra.mxu0 %v169
  %179 = vmatprep.subr.bf16.mxu0 0
  %180 = vmatpush1.bf16.msra.mxu0 %v170
  %181 = vmatprep.subr.bf16.mxu0 0
  %182 = vmatpush1.bf16.msra.mxu0 0
  %183 = vmatprep.subr.bf16.mxu0 0
  %184 = vmatpush1.bf16.msra.mxu0 0
  %185 = vmatprep.subr.bf16.mxu0 0
  %186 = vmatpush1.bf16.msra.mxu0 0
  %187 = vmatprep.subr.bf16.mxu0 0
  %188 = vmatpush1.bf16.msra.mxu0 0
  %189 = vmatprep.subr.bf16.mxu0 0
  %190 = vmatpush1.bf16.msra.mxu0 0
  %191 = vmatprep.subr.bf16.mxu0 0
  %192 = vmatpush1.bf16.msra.mxu0 0
  %193 = vmatprep.subr.bf16.mxu0 0
  %194 = vmatpush1.bf16.msra.mxu0 0
  %195 = vmatprep.subr.bf16.mxu0 0
  %196 = vmatpush1.bf16.msra.mxu0 0
  %197 = vmatprep.subr.bf16.mxu0 0
  %198 = vmatpush1.bf16.msra.mxu0 0
  %199 = vmatprep.subr.bf16.mxu0 0
  %200 = vmatpush1.bf16.msra.mxu0 0
  %201 = vmatprep.subr.bf16.mxu0 0
  %202 = vmatpush1.bf16.msra.mxu0 0
  %203 = vmatprep.subr.bf16.mxu0 0
  %204 = vmatpush1.bf16.msra.mxu0 0
  %205 = vmatprep.subr.bf16.mxu0 0
  %206 = vmatpush1.bf16.msra.mxu0 0
  %207 = vmatprep.subr.bf16.mxu0 0
  %208 = vmatpush1.bf16.msra.mxu0 0
  %209 = vmatprep.mubr.bf16.mxu0 0
  %210 = vmatmul.mubr.bf16.gmra.mrb[0].mxu0 %v175
  %v211 = vpop.f32.mrb[0].mxu0
  %v212 = vadd.f32 %v159, %v211
  %v213 = vpop.f32.mrb[0].mxu0
  %v214 = vpop.f32.mrb[0].mxu0
  %v215 = vpop.f32.mrb[0].mxu0
  %216 = vdwg.mxu0
  %v217 = vmax.f32 %v212, 0.0
  %v218 = vpack.c.bf16 %v217, %v217
  %v219 = vld [vmem:[%s5] sm:$0xf]
  %v220 = vld [vmem:[%s5 + $0x4] sm:$0xf]
  %v221 = vld [vmem:[%s6] sm:$0x1]
  %v223 = vlaneseq
  %v224 = vshrl.u32 %v223, 7
  %v225 = vsub.s32 0, %v224
  %v226 = vrot.slane %v221, %v225
  %v230 = vunpack.c.l.b16 %v219
  %v231 = vunpack.c.l.b16 %v220
  %v232 = vpack.c.b16 %v231, %v230
  %vm234 = vcmask 130048
  %v236 = vsel %vm234, %v218, 0
  %238 = vmatprep.subr.bf16.mxu0 0
  %239 = vmatpush1.bf16.msra.mxu0 %v232
  %240 = vmatprep.subr.bf16.mxu0 0
  %241 = vmatpush1.bf16.msra.mxu0 0
  %242 = vmatprep.subr.bf16.mxu0 0
  %243 = vmatpush1.bf16.msra.mxu0 0
  %244 = vmatprep.subr.bf16.mxu0 0
  %245 = vmatpush1.bf16.msra.mxu0 0
  %246 = vmatprep.subr.bf16.mxu0 0
  %247 = vmatpush1.bf16.msra.mxu0 0
  %248 = vmatprep.subr.bf16.mxu0 0
  %249 = vmatpush1.bf16.msra.mxu0 0
  %250 = vmatprep.subr.bf16.mxu0 0
  %251 = vmatpush1.bf16.msra.mxu0 0
  %252 = vmatprep.subr.bf16.mxu0 0
  %253 = vmatpush1.bf16.msra.mxu0 0
  %254 = vmatprep.subr.bf16.mxu0 0
  %255 = vmatpush1.bf16.msra.mxu0 0
  %256 = vmatprep.subr.bf16.mxu0 0
  %257 = vmatpush1.bf16.msra.mxu0 0
  %258 = vmatprep.subr.bf16.mxu0 0
  %259 = vmatpush1.bf16.msra.mxu0 0
  %260 = vmatprep.subr.bf16.mxu0 0
  %261 = vmatpush1.bf16.msra.mxu0 0
  %262 = vmatprep.subr.bf16.mxu0 0
  %263 = vmatpush1.bf16.msra.mxu0 0
  %264 = vmatprep.subr.bf16.mxu0 0
  %265 = vmatpush1.bf16.msra.mxu0 0
  %266 = vmatprep.subr.bf16.mxu0 0
  %267 = vmatpush1.bf16.msra.mxu0 0
  %268 = vmatprep.subr.bf16.mxu0 0
  %269 = vmatpush1.bf16.msra.mxu0 0
  %270 = vmatprep.mubr.bf16.mxu0 0
  %271 = vmatmul.mubr.bf16.gmra.mrb[0].mxu0 %v236
  %v272 = vpop.f32.mrb[0].mxu0
  %v273 = vadd.f32 %v226, %v272
  %v274 = vpop.f32.mrb[0].mxu0
  %v275 = vpop.f32.mrb[0].mxu0
  %v276 = vpop.f32.mrb[0].mxu0
  %277 = vdwg.mxu0
  %v278 = vmax.f32 %v273, 0.0
  %v279 = vpack.c.bf16 %v278, %v278
  %v280 = vld [vmem:[%s7] sm:$0xf]
  %v281 = vld [vmem:[#allocation2] sm:$0x1]
  %v283 = vlaneseq
  %v284 = vshrl.u32 %v283, 7
  %v285 = vsub.s32 0, %v284
  %v286 = vrot.slane %v281, %v285
  %vm288 = vcmask 64512
  %v290 = vsel %vm288, %v279, 0
  %vm292 = vcmask 1043456
  %v294 = vsel %vm292, %v280, 0
  %296 = vmatprep.subr.bf16.mxu0 0
  %297 = vmatpush1.bf16.msra.mxu0 %v294
  %298 = vmatprep.subr.bf16.mxu0 0
  %299 = vmatpush1.bf16.msra.mxu0 0
  %300 = vmatprep.subr.bf16.mxu0 0
  %301 = vmatpush1.bf16.msra.mxu0 0
  %302 = vmatprep.subr.bf16.mxu0 0
  %303 = vmatpush1.bf16.msra.mxu0 0
  %304 = vmatprep.subr.bf16.mxu0 0
  %305 = vmatpush1.bf16.msra.mxu0 0
  %306 = vmatprep.subr.bf16.mxu0 0
  %307 = vmatpush1.bf16.msra.mxu0 0
  %308 = vmatprep.subr.bf16.mxu0 0
  %309 = vmatpush1.bf16.msra.mxu0 0
  %310 = vmatprep.subr.bf16.mxu0 0
  %311 = vmatpush1.bf16.msra.mxu0 0
  %312 = vmatprep.subr.bf16.mxu0 0
  %313 = vmatpush1.bf16.msra.mxu0 0
  %314 = vmatprep.subr.bf16.mxu0 0
  %315 = vmatpush1.bf16.msra.mxu0 0
  %316 = vmatprep.subr.bf16.mxu0 0
  %317 = vmatpush1.bf16.msra.mxu0 0
  %318 = vmatprep.subr.bf16.mxu0 0
  %319 = vmatpush1.bf16.msra.mxu0 0
  %320 = vmatprep.subr.bf16.mxu0 0
  %321 = vmatpush1.bf16.msra.mxu0 0
  %322 = vmatprep.subr.bf16.mxu0 0
  %323 = vmatpush1.bf16.msra.mxu0 0
  %324 = vmatprep.subr.bf16.mxu0 0
  %325 = vmatpush1.bf16.msra.mxu0 0
  %326 = vmatprep.subr.bf16.mxu0 0
  %327 = vmatpush1.bf16.msra.mxu0 0
  %328 = vmatprep.mubr.bf16.mxu0 0
  %329 = vmatmul.mubr.bf16.gmra.mrb[0].mxu0 %v290
  %v330 = vpop.f32.mrb[0].mxu0
  %v331 = vadd.f32 %v286, %v330
  %v332 = vpop.f32.mrb[0].mxu0
  %v333 = vpop.f32.mrb[0].mxu0
  %v334 = vpop.f32.mrb[0].mxu0
  %335 = vdwg.mxu0
  %vm336 = vcmask 3072
  %337 = vst.msk [vmem:[%s9] sm:$0xf] %vm336, %v331
  // Predicated region
  $region38: #{_lambda_.4} parent=0 // pred_check
    _
  $region39: #{_lambda_.4} parent=0 // pred_check_branch
    %339 = sbr.rel (0) target = $region41
  $region40: #{_lambda_.4} parent=0 // pred_region
    _
  $region41: #{_lambda_.4} parent=0 // pred_fallthru
    _
  // Predicated region
  $region42: #{_lambda_.4} parent=0 // pred_check
    _
  $region43: #{_lambda_.4} parent=0 // pred_check_branch
    %341 = sbr.rel (0) target = $region45
  $region44: #{_lambda_.4} parent=0 // pred_region
    _
  $region45: #{_lambda_.4} parent=0 // pred_fallthru
    _

// kernel: _lambda_.3
$region0: #{_lambda_.3}
  #allocation0 [shape = 'u32[]', space=smem, size = 0x4, offset = 0x4, fixed_abs, tag = 'smem constant byte address 0x4 - core index']
  #allocation1 [shape = 'u32[144,128]{1,0:T(1,128)}', space=vmem, size = 0x12000, scoped, tag = 'internal scratch']
  #allocation2 [shape = 'f32[4,128]{1,0:T(4,128)}', space=vmem, size = 0x800, scoped, tag = 'scratch operand']
  %s0 = inlined_call_operand.vmem [shape: f32[4,128], index: 0, kind: input, shape index: {}]
  %s1 = inlined_call_operand.vmem [shape: bf16[2,3,128,128], index: 1, kind: input, shape index: {}]
  %s2 = inlined_call_operand.vmem [shape: f32[2,3,1,128], index: 2, kind: input, shape index: {}]
  %s3 = inlined_call_operand.vmem [shape: bf16[2,2,128,128], index: 3, kind: input, shape index: {}]
  %s4 = inlined_call_operand.vmem [shape: bf16[2,128,128], index: 4, kind: input, shape index: {}]
  %s5 = inlined_call_operand.vmem [shape: f32[2,1,128], index: 5, kind: input, shape index: {}]
  %s6 = inlined_call_operand.vmem [shape: f32[4,128], index: 6, kind: output, shape index: {}]
  %s7 = sld [smem:[#allocation0]]
  $region61: #{_lambda_.3} parent=0
    _
  %s9 = ssub.s32 1, %s7
  %s10 = scalar_select 0, %s9, %s7
  loop: start=0, step=1, limit=4
  $region2: #{_lambda_.3} parent=0 // loop_pre_header
    _
  $region3: #{_lambda_.3} parent=0 // loop_header
    %s12 = sphi 0, %s16
    %p13 = scmp.ge.s32.totalorder %s12, 4
    %s20 = sphi 0, %s20
    %s22 = sphi 0, %s20
    %s23 = sphi 0, %s22
    %s37 = sphi 0, %s23
    %s43 = sphi 0, %s45
    %s46 = sphi 0, %s43
    %s47 = sphi 0, %s46
    %s63 = sphi 0, %s47
    %s69 = sphi 0, %s71
    %s72 = sphi 0, %s69
    %s73 = sphi 0, %s72
    %s89 = sphi 0, %s73
    %s95 = sphi 0, %s97
    %s98 = sphi 0, %s95
    %s99 = sphi 0, %s98
    %s115 = sphi 0, %s99
    %s121 = sphi 0, %s123
    %s124 = sphi 0, %s121
    %s125 = sphi 0, %s124
    %s141 = sphi 0, %s125
    %s147 = sphi 0, %s149
    %s150 = sphi 0, %s147
    %s151 = sphi 0, %s150
    %s167 = sphi 0, %s151
    %s171 = sphi 0, %s171
    %s173 = sphi 0, %s171
    %s174 = sphi 0, %s173
    %s188 = sphi 0, %s174
  $region4: #{_lambda_.3} parent=0 // loop_header_branch
    %15 = sbr.rel (%p13) target = $region8
  $region5: #{_lambda_.3} parent=0 // loop_body
    %s17 = ssub.s32 %s12, 1
    %s18 = ssub.s32 %s12, 2
    %s19 = sadd.s32 %s12, 1
    %s21 = sadd.s32 %s20, 1
    %p24 = scmp.eq.s32.totalorder %s12, 1
    %p25 = scmp.ne.s32.totalorder %s20, %s22
    %p26 = scmp.eq.s32.totalorder %s12, 0
    %p27 = por %p25, %p26
    %p28 = scmp.ne.s32.totalorder %s20, %s22
    %p29 = scmp.eq.s32.totalorder %s17, 1
    %p30 = por %p28, %p29
    %p31 = scmp.ne.s32.totalorder %s22, %s23
    %p32 = scmp.eq.s32.totalorder %s17, 0
    %p33 = por %p31, %p32
    %p34 = scmp.ne.s32.totalorder %s22, %s23
    %p35 = scmp.eq.s32.totalorder %s18, 1
    %p36 = por %p34, %p35
    %p38 = scmp.ne.s32.totalorder %s23, %s37
    %p39 = scmp.eq.s32.totalorder %s18, 0
    %p40 = por %p38, %p39
    %s41 = ssub.s32 %s12, %s19
    %p42 = scmp.eq.s32.totalorder %s41, 0
    %s44 = sadd.s32 %s43, 1
    %s45 = scalar_select %p42, %s43, %s44
    %p48 = pneg %p42
    %p49 = scmp.eq.s32.totalorder %s12, 1
    %p50 = por %p48, %p49
    %p51 = scmp.ne.s32.totalorder %s43, %s46
    %p52 = scmp.eq.s32.totalorder %s12, 0
    %p53 = por %p51, %p52
    %p54 = scmp.ne.s32.totalorder %s43, %s46
    %p55 = scmp.eq.s32.totalorder %s17, 1
    %p56 = por %p54, %p55
    %p57 = scmp.ne.s32.totalorder %s46, %s47
    %p58 = scmp.eq.s32.totalorder %s17, 0
    %p59 = por %p57, %p58
    %p60 = scmp.ne.s32.totalorder %s46, %s47
    %p61 = scmp.eq.s32.totalorder %s18, 1
    %p62 = por %p60, %p61
    %p64 = scmp.ne.s32.totalorder %s47, %s63
    %p65 = scmp.eq.s32.totalorder %s18, 0
    %p66 = por %p64, %p65
    %s67 = ssub.s32 %s12, %s19
    %p68 = scmp.eq.s32.totalorder %s67, 0
    %s70 = sadd.s32 %s69, 1
    %s71 = scalar_select %p68, %s69, %s70
    %p74 = pneg %p68
    %p75 = scmp.eq.s32.totalorder %s12, 1
    %p76 = por %p74, %p75
    %p77 = scmp.ne.s32.totalorder %s69, %s72
    %p78 = scmp.eq.s32.totalorder %s12, 0
    %p79 = por %p77, %p78
    %p80 = scmp.ne.s32.totalorder %s69, %s72
    %p81 = scmp.eq.s32.totalorder %s17, 1
    %p82 = por %p80, %p81
    %p83 = scmp.ne.s32.totalorder %s72, %s73
    %p84 = scmp.eq.s32.totalorder %s17, 0
    %p85 = por %p83, %p84
    %p86 = scmp.ne.s32.totalorder %s72, %s73
    %p87 = scmp.eq.s32.totalorder %s18, 1
    %p88 = por %p86, %p87
    %p90 = scmp.ne.s32.totalorder %s73, %s89
    %p91 = scmp.eq.s32.totalorder %s18, 0
    %p92 = por %p90, %p91
    %s93 = ssub.s32 %s12, %s19
    %p94 = scmp.eq.s32.totalorder %s93, 0
    %s96 = sadd.s32 %s95, 1
    %s97 = scalar_select %p94, %s95, %s96
    %p100 = pneg %p94
    %p101 = scmp.eq.s32.totalorder %s12, 1
    %p102 = por %p100, %p101
    %p103 = scmp.ne.s32.totalorder %s95, %s98
    %p104 = scmp.eq.s32.totalorder %s12, 0
    %p105 = por %p103, %p104
    %p106 = scmp.ne.s32.totalorder %s95, %s98
    %p107 = scmp.eq.s32.totalorder %s17, 1
    %p108 = por %p106, %p107
    %p109 = scmp.ne.s32.totalorder %s98, %s99
    %p110 = scmp.eq.s32.totalorder %s17, 0
    %p111 = por %p109, %p110
    %p112 = scmp.ne.s32.totalorder %s98, %s99
    %p113 = scmp.eq.s32.totalorder %s18, 1
    %p114 = por %p112, %p113
    %p116 = scmp.ne.s32.totalorder %s99, %s115
    %p117 = scmp.eq.s32.totalorder %s18, 0
    %p118 = por %p116, %p117
    %s119 = ssub.s32 %s12, %s19
    %p120 = scmp.eq.s32.totalorder %s119, 0
    %s122 = sadd.s32 %s121, 1
    %s123 = scalar_select %p120, %s121, %s122
    %p126 = pneg %p120
    %p127 = scmp.eq.s32.totalorder %s12, 1
    %p128 = por %p126, %p127
    %p129 = scmp.ne.s32.totalorder %s121, %s124
    %p130 = scmp.eq.s32.totalorder %s12, 0
    %p131 = por %p129, %p130
    %p132 = scmp.ne.s32.totalorder %s121, %s124
    %p133 = scmp.eq.s32.totalorder %s17, 1
    %p134 = por %p132, %p133
    %p135 = scmp.ne.s32.totalorder %s124, %s125
    %p136 = scmp.eq.s32.totalorder %s17, 0
    %p137 = por %p135, %p136
    %p138 = scmp.ne.s32.totalorder %s124, %s125
    %p139 = scmp.eq.s32.totalorder %s18, 1
    %p140 = por %p138, %p139
    %p142 = scmp.ne.s32.totalorder %s125, %s141
    %p143 = scmp.eq.s32.totalorder %s18, 0
    %p144 = por %p142, %p143
    %s145 = ssub.s32 %s12, %s19
    %p146 = scmp.eq.s32.totalorder %s145, 0
    %s148 = sadd.s32 %s147, 1
    %s149 = scalar_select %p146, %s147, %s148
    %p152 = pneg %p146
    %p153 = scmp.eq.s32.totalorder %s12, 1
    %p154 = por %p152, %p153
    %p155 = scmp.ne.s32.totalorder %s147, %s150
    %p156 = scmp.eq.s32.totalorder %s12, 0
    %p157 = por %p155, %p156
    %p158 = scmp.ne.s32.totalorder %s147, %s150
    %p159 = scmp.eq.s32.totalorder %s17, 1
    %p160 = por %p158, %p159
    %p161 = scmp.ne.s32.totalorder %s150, %s151
    %p162 = scmp.eq.s32.totalorder %s17, 0
    %p163 = por %p161, %p162
    %p164 = scmp.ne.s32.totalorder %s150, %s151
    %p165 = scmp.eq.s32.totalorder %s18, 1
    %p166 = por %p164, %p165
    %p168 = scmp.ne.s32.totalorder %s151, %s167
    %p169 = scmp.eq.s32.totalorder %s18, 0
    %p170 = por %p168, %p169
    %s172 = sadd.s32 %s171, 1
    %p175 = scmp.eq.s32.totalorder %s12, 1
    %p176 = scmp.ne.s32.totalorder %s171, %s173
    %p177 = scmp.eq.s32.totalorder %s12, 0
    %p178 = por %p176, %p177
    %p179 = scmp.ne.s32.totalorder %s171, %s173
    %p180 = scmp.eq.s32.totalorder %s17, 1
    %p181 = por %p179, %p180
    %p182 = scmp.ne.s32.totalorder %s173, %s174
    %p183 = scmp.eq.s32.totalorder %s17, 0
    %p184 = por %p182, %p183
    %p185 = scmp.ne.s32.totalorder %s173, %s174
    %p186 = scmp.eq.s32.totalorder %s18, 1
    %p187 = por %p185, %p186
    %p189 = scmp.ne.s32.totalorder %s174, %s188
    %p190 = scmp.eq.s32.totalorder %s18, 0
    %p191 = por %p189, %p190
    %p192 = scmp.le.s32.totalorder 1, %s12
    %p193 = scmp.lt.s32.totalorder %s12, 3
    %p194 = pnand %p192, %p193
    %p195 = pneg %p194
    // Predicated region
    $region9: #{_lambda_.3} parent=5 // pred_check
      _
    $region10: #{_lambda_.3} parent=5 // pred_check_branch
      %197 = sbr.rel (%p194) target = $region12
    $region11: #{_lambda_.3} parent=5 // pred_region
      %s198 = ssub.s32 %s12, 1
      // Predicated region
      $region13: #{_lambda_.3} parent=11 // pred_check
        %p199 = pneg %p33
      $region14: #{_lambda_.3} parent=11 // pred_check_branch
        %201 = sbr.rel (%p199) target = $region16
      $region15: #{_lambda_.3} parent=11 // pred_region
        _
      $region16: #{_lambda_.3} parent=11 // pred_fallthru
        _
    $region12: #{_lambda_.3} parent=5 // pred_fallthru
      _
    %p202 = scmp.lt.s32.totalorder %s12, 2
    // Predicated region
    $region17: #{_lambda_.3} parent=5 // pred_check
      %p203 = pneg %p202
    $region18: #{_lambda_.3} parent=5 // pred_check_branch
      %205 = sbr.rel (%p203) target = $region20
    $region19: #{_lambda_.3} parent=5 // pred_region
      // Predicated region
      $region21: #{_lambda_.3} parent=19 // pred_check
        %p206 = pneg %p53
      $region22: #{_lambda_.3} parent=19 // pred_check_branch
        %208 = sbr.rel (%p206) target = $region24
      $region23: #{_lambda_.3} parent=19 // pred_region
        %p209 = scmp.lt.s32.totalorder %s12, 1
        %s210 = scalar_select %p209, %s12, 1
        %s211 = smul.addr %s210, 48
        %s212 = smul.addr %s211, 4
        %s213 = scalar_lea.vmem %s1, %s212
      $region24: #{_lambda_.3} parent=19 // pred_fallthru
        _
      // Predicated region
      $region25: #{_lambda_.3} parent=19 // pred_check
        %p214 = pneg %p79
      $region26: #{_lambda_.3} parent=19 // pred_check_branch
        %216 = sbr.rel (%p214) target = $region28
      $region27: #{_lambda_.3} parent=19 // pred_region
        %p217 = scmp.lt.s32.totalorder %s12, 1
        %s218 = scalar_select %p217, %s12, 1
        %s219 = smul.addr %s218, 3
        %s220 = scalar_lea.vmem %s2, %s219
      $region28: #{_lambda_.3} parent=19 // pred_fallthru
        _
      // Predicated region
      $region29: #{_lambda_.3} parent=19 // pred_check
        %p221 = pneg %p105
      $region30: #{_lambda_.3} parent=19 // pred_check_branch
        %223 = sbr.rel (%p221) target = $region32
      $region31: #{_lambda_.3} parent=19 // pred_region
        %p224 = scmp.lt.s32.totalorder %s12, 1
        %s225 = scalar_select %p224, %s12, 1
        %s226 = smul.addr %s225, 32
        %s227 = smul.addr %s226, 4
        %s228 = scalar_lea.vmem %s3, %s227
      $region32: #{_lambda_.3} parent=19 // pred_fallthru
        _
      // Predicated region
      $region33: #{_lambda_.3} parent=19 // pred_check
        %p229 = pneg %p131
      $region34: #{_lambda_.3} parent=19 // pred_check_branch
        %231 = sbr.rel (%p229) target = $region36
      $region35: #{_lambda_.3} parent=19 // pred_region
        %p232 = scmp.lt.s32.totalorder %s12, 1
        %s233 = scalar_select %p232, %s12, 1
        %s234 = smul.addr %s233, 16
        %s235 = smul.addr %s234, 4
        %s236 = scalar_lea.vmem %s4, %s235
      $region36: #{_lambda_.3} parent=19 // pred_fallthru
        _
      // Predicated region
      $region37: #{_lambda_.3} parent=19 // pred_check
        %p237 = pneg %p157
      $region38: #{_lambda_.3} parent=19 // pred_check_branch
        %239 = sbr.rel (%p237) target = $region40
      $region39: #{_lambda_.3} parent=19 // pred_region
        %p240 = scmp.lt.s32.totalorder %s12, 1
        %s241 = scalar_select %p240, %s12, 1
        %s242 = scalar_lea.vmem %s5, %s241
      $region40: #{_lambda_.3} parent=19 // pred_fallthru
        _
    $region20: #{_lambda_.3} parent=5 // pred_fallthru
      _
    %p243 = scmp.le.s32.totalorder 1, %s12
    %p244 = scmp.lt.s32.totalorder %s12, 3
    %p245 = pnand %p243, %p244
    %p246 = pneg %p245
    // Predicated region
    $region41: #{_lambda_.3} parent=5 // pred_check
      _
    $region42: #{_lambda_.3} parent=5 // pred_check_branch
      %248 = sbr.rel (%p245) target = $region44
    $region43: #{_lambda_.3} parent=5 // pred_region
      %s249 = ssub.s32 %s12, 1
      %p250 = pneg %p33
      %p251 = pneg %p30
      %p252 = scmp.lt.s32.totalorder %s17, 1
      %s253 = scalar_select %p252, %s17, 1
      %s254 = smul.addr %s253, 48
      %s255 = smul.addr %s254, 4
      %s256 = scalar_lea.vmem %s1, %s255
      %p257 = pneg %p59
      %p258 = pneg %p56
      %p259 = scmp.lt.s32.totalorder %s17, 1
      %s260 = scalar_select %p259, %s17, 1
      %s261 = smul.addr %s260, 3
      %s262 = scalar_lea.vmem %s2, %s261
      %p263 = pneg %p85
      %p264 = pneg %p82
      %p265 = scmp.lt.s32.totalorder %s17, 1
      %s266 = scalar_select %p265, %s17, 1
      %s267 = smul.addr %s266, 32
      %s268 = smul.addr %s267, 4
      %s269 = scalar_lea.vmem %s3, %s268
      %p270 = pneg %p111
      %p271 = pneg %p108
      %p272 = scmp.lt.s32.totalorder %s17, 1
      %s273 = scalar_select %p272, %s17, 1
      %s274 = smul.addr %s273, 16
      %s275 = smul.addr %s274, 4
      %s276 = scalar_lea.vmem %s4, %s275
      %p277 = pneg %p137
      %p278 = pneg %p134
      %p279 = scmp.lt.s32.totalorder %s17, 1
      %s280 = scalar_select %p279, %s17, 1
      %s281 = scalar_lea.vmem %s5, %s280
      %p282 = pneg %p163
      %p283 = pneg %p160
      %p284 = pneg %p184
      %p285 = pneg %p181
      %p286 = scmp.lt.s32.totalorder %s17, 1
      %s287 = scalar_select %p286, %s17, 1
      %s288 = smul.addr %s287, 48
      %s289 = smul.addr %s288, 4
      %s290 = scalar_lea.vmem %s1, %s289
      %p291 = scmp.lt.s32.totalorder %s17, 1
      %s292 = scalar_select %p291, %s17, 1
      %s293 = smul.addr %s292, 3
      %s294 = scalar_lea.vmem %s2, %s293
      %p295 = scmp.lt.s32.totalorder %s17, 1
      %s296 = scalar_select %p295, %s17, 1
      %s297 = smul.addr %s296, 32
      %s298 = smul.addr %s297, 4
      %s299 = scalar_lea.vmem %s3, %s298
      %p300 = scmp.lt.s32.totalorder %s17, 1
      %s301 = scalar_select %p300, %s17, 1
      %s302 = smul.addr %s301, 16
      %s303 = smul.addr %s302, 4
      %s304 = scalar_lea.vmem %s4, %s303
      %p305 = scmp.lt.s32.totalorder %s17, 1
      %s306 = scalar_select %p305, %s17, 1
      %s307 = scalar_lea.vmem %s5, %s306
      %p309 = scmp.eq.s32.totalorder %s17, 0
      // Predicated region
      $region45: #{_lambda_.3} parent=43 // pred_check
        %p310 = pneg %p309
      $region46: #{_lambda_.3} parent=43 // pred_check_branch
        %312 = sbr.rel (%p310) target = $region48
      $region47: #{_lambda_.3} parent=43 // pred_region
        %v313 = vld [vmem:[%s0] sm:$0xf]
        %314 = vst [vmem:[#allocation2] sm:$0xf] %v313
      $region48: #{_lambda_.3} parent=43 // pred_fallthru
        _
      %v315 = vld [vmem:[#allocation2] sm:$0xf]
      %v316 = vpack.c.bf16 %v315, %v315
      %v317 = vld [vmem:[%s290] sm:$0xf]
      %v318 = vld [vmem:[%s290 + $0x4] sm:$0xf]
      %v319 = vld [vmem:[%s290 + $0x8] sm:$0xf]
      %v320 = vld [vmem:[%s290 + $0xc] sm:$0xf]
      %v321 = vld [vmem:[%s290 + $0x10] sm:$0xf]
      %v322 = vld [vmem:[%s290 + $0x14] sm:$0xf]
      %v323 = vld [vmem:[%s290 + $0x18] sm:$0xf]
      %v324 = vld [vmem:[%s290 + $0x1c] sm:$0xf]
      %v325 = vld [vmem:[%s290 + $0x20] sm:$0xf]
      %v326 = vld [vmem:[%s290 + $0x24] sm:$0xf]
      %v327 = vld [vmem:[%s290 + $0x28] sm:$0xf]
      %v328 = vld [vmem:[%s290 + $0x2c] sm:$0xf]
      %v329 = vld [vmem:[%s290 + $0x30] sm:$0xf]
      %v330 = vld [vmem:[%s290 + $0x34] sm:$0xf]
      %v331 = vld [vmem:[%s290 + $0x38] sm:$0xf]
      %v332 = vld [vmem:[%s290 + $0x3c] sm:$0xf]
      %v333 = vld [vmem:[%s294] sm:$0x1]
      %v335 = vlaneseq
      %v336 = vshrl.u32 %v335, 7
      %v337 = vsub.s32 0, %v336
      %v338 = vrot.slane %v333, %v337
      %v356 = vunpack.c.l.b16 %v317
      %v357 = vunpack.c.l.b16 %v318
      %v358 = vunpack.c.l.b16 %v319
      %v359 = vunpack.c.l.b16 %v320
      %v360 = vunpack.c.l.b16 %v321
      %v361 = vunpack.c.l.b16 %v322
      %v362 = vunpack.c.l.b16 %v323
      %v363 = vunpack.c.l.b16 %v324
      %v364 = vunpack.c.l.b16 %v325
      %v365 = vunpack.c.l.b16 %v326
      %v366 = vunpack.c.l.b16 %v327
      %v367 = vunpack.c.l.b16 %v328
      %v368 = vunpack.c.l.b16 %v329
      %v369 = vunpack.c.l.b16 %v330
      %v370 = vunpack.c.l.b16 %v331
      %v371 = vunpack.c.l.b16 %v332
      %v372 = vpack.c.b16 %v357, %v356
      %v373 = vpack.c.b16 %v359, %v358
      %v374 = vpack.c.b16 %v361, %v360
      %v375 = vpack.c.b16 %v363, %v362
      %v376 = vpack.c.b16 %v365, %v364
      %v377 = vpack.c.b16 %v367, %v366
      %v378 = vpack.c.b16 %v369, %v368
      %v379 = vpack.c.b16 %v371, %v370
      %388 = vmatprep.subr.bf16.mxu0 0
      %389 = vmatpush1.bf16.msra.mxu0 %v372
      %390 = vmatprep.subr.bf16.mxu0 0
      %391 = vmatpush1.bf16.msra.mxu0 %v373
      %392 = vmatprep.subr.bf16.mxu0 0
      %393 = vmatpush1.bf16.msra.mxu0 %v374
      %394 = vmatprep.subr.bf16.mxu0 0
      %395 = vmatpush1.bf16.msra.mxu0 %v375
      %396 = vmatprep.subr.bf16.mxu0 0
      %397 = vmatpush1.bf16.msra.mxu0 %v376
      %398 = vmatprep.subr.bf16.mxu0 0
      %399 = vmatpush1.bf16.msra.mxu0 %v377
      %400 = vmatprep.subr.bf16.mxu0 0
      %401 = vmatpush1.bf16.msra.mxu0 %v378
      %402 = vmatprep.subr.bf16.mxu0 0
      %403 = vmatpush1.bf16.msra.mxu0 %v379
      %404 = vmatprep.subr.bf16.mxu0 0
      %405 = vmatpush1.bf16.msra.mxu0 0
      %406 = vmatprep.subr.bf16.mxu0 0
      %407 = vmatpush1.bf16.msra.mxu0 0
      %408 = vmatprep.subr.bf16.mxu0 0
      %409 = vmatpush1.bf16.msra.mxu0 0
      %410 = vmatprep.subr.bf16.mxu0 0
      %411 = vmatpush1.bf16.msra.mxu0 0
      %412 = vmatprep.subr.bf16.mxu0 0
      %413 = vmatpush1.bf16.msra.mxu0 0
      %414 = vmatprep.subr.bf16.mxu0 0
      %415 = vmatpush1.bf16.msra.mxu0 0
      %416 = vmatprep.subr.bf16.mxu0 0
      %417 = vmatpush1.bf16.msra.mxu0 0
      %418 = vmatprep.subr.bf16.mxu0 0
      %419 = vmatpush1.bf16.msra.mxu0 0
      %420 = vmatprep.mubr.bf16.mxu0 0
      %421 = vmatmul.mubr.bf16.gmra.mrb[0].mxu0 %v316
      %v422 = vpop.f32.mrb[0].mxu0
      %v423 = vadd.f32 %v338, %v422
      %v424 = vpop.f32.mrb[0].mxu0
      %v425 = vpop.f32.mrb[0].mxu0
      %v426 = vpop.f32.mrb[0].mxu0
      %427 = vdwg.mxu0
      %s428 = scalar_lea.vmem %s290, 64
      %v429 = vld [vmem:[%s428] sm:$0xf]
      %v430 = vld [vmem:[%s428 + $0x4] sm:$0xf]
      %v431 = vld [vmem:[%s428 + $0x8] sm:$0xf]
      %v432 = vld [vmem:[%s428 + $0xc] sm:$0xf]
      %v433 = vld [vmem:[%s428 + $0x10] sm:$0xf]
      %v434 = vld [vmem:[%s428 + $0x14] sm:$0xf]
      %v435 = vld [vmem:[%s428 + $0x18] sm:$0xf]
      %v436 = vld [vmem:[%s428 + $0x1c] sm:$0xf]
      %v437 = vld [vmem:[%s428 + $0x20] sm:$0xf]
      %v438 = vld [vmem:[%s428 + $0x24] sm:$0xf]
      %v439 = vld [vmem:[%s428 + $0x28] sm:$0xf]
      %v440 = vld [vmem:[%s428 + $0x2c] sm:$0xf]
      %v441 = vld [vmem:[%s428 + $0x30] sm:$0xf]
      %v442 = vld [vmem:[%s428 + $0x34] sm:$0xf]
      %v443 = vld [vmem:[%s428 + $0x38] sm:$0xf]
      %v444 = vld [vmem:[%s428 + $0x3c] sm:$0xf]
      %s445 = scalar_lea.vmem %s294, 1
      %v446 = vld [vmem:[%s445] sm:$0x1]
      %v448 = vlaneseq
      %v449 = vshrl.u32 %v448, 7
      %v450 = vsub.s32 0, %v449
      %v451 = vrot.slane %v446, %v450
      %v469 = vunpack.c.l.b16 %v429
      %v470 = vunpack.c.l.b16 %v430
      %v471 = vunpack.c.l.b16 %v431
      %v472 = vunpack.c.l.b16 %v432
      %v473 = vunpack.c.l.b16 %v433
      %v474 = vunpack.c.l.b16 %v434
      %v475 = vunpack.c.l.b16 %v435
      %v476 = vunpack.c.l.b16 %v436
      %v477 = vunpack.c.l.b16 %v437
      %v478 = vunpack.c.l.b16 %v438
      %v479 = vunpack.c.l.b16 %v439
      %v480 = vunpack.c.l.b16 %v440
      %v481 = vunpack.c.l.b16 %v441
      %v482 = vunpack.c.l.b16 %v442
      %v483 = vunpack.c.l.b16 %v443
      %v484 = vunpack.c.l.b16 %v444
      %v485 = vpack.c.b16 %v470, %v469
      %v486 = vpack.c.b16 %v472, %v471
      %v487 = vpack.c.b16 %v474, %v473
      %v488 = vpack.c.b16 %v476, %v475
      %v489 = vpack.c.b16 %v478, %v477
      %v490 = vpack.c.b16 %v480, %v479
      %v491 = vpack.c.b16 %v482, %v481
      %v492 = vpack.c.b16 %v484, %v483
      %501 = vmatprep.subr.bf16.mxu0 0
      %502 = vmatpush1.bf16.msra.mxu0 %v485
      %503 = vmatprep.subr.bf16.mxu0 0
      %504 = vmatpush1.bf16.msra.mxu0 %v486
      %505 = vmatprep.subr.bf16.mxu0 0
      %506 = vmatpush1.bf16.msra.mxu0 %v487
      %507 = vmatprep.subr.bf16.mxu0 0
      %508 = vmatpush1.bf16.msra.mxu0 %v488
      %509 = vmatprep.subr.bf16.mxu0 0
      %510 = vmatpush1.bf16.msra.mxu0 %v489
      %511 = vmatprep.subr.bf16.mxu0 0
      %512 = vmatpush1.bf16.msra.mxu0 %v490
      %513 = vmatprep.subr.bf16.mxu0 0
      %514 = vmatpush1.bf16.msra.mxu0 %v491
      %515 = vmatprep.subr.bf16.mxu0 0
      %516 = vmatpush1.bf16.msra.mxu0 %v492
      %517 = vmatprep.subr.bf16.mxu0 0
      %518 = vmatpush1.bf16.msra.mxu0 0
      %519 = vmatprep.subr.bf16.mxu0 0
      %520 = vmatpush1.bf16.msra.mxu0 0
      %521 = vmatprep.subr.bf16.mxu0 0
      %522 = vmatpush1.bf16.msra.mxu0 0
      %523 = vmatprep.subr.bf16.mxu0 0
      %524 = vmatpush1.bf16.msra.mxu0 0
      %525 = vmatprep.subr.bf16.mxu0 0
      %526 = vmatpush1.bf16.msra.mxu0 0
      %527 = vmatprep.subr.bf16.mxu0 0
      %528 = vmatpush1.bf16.msra.mxu0 0
      %529 = vmatprep.subr.bf16.mxu0 0
      %530 = vmatpush1.bf16.msra.mxu0 0
      %531 = vmatprep.subr.bf16.mxu0 0
      %532 = vmatpush1.bf16.msra.mxu0 0
      %533 = vmatprep.mubr.bf16.mxu0 0
      %534 = vmatmul.mubr.bf16.gmra.mrb[0].mxu0 %v316
      %v535 = vpop.f32.mrb[0].mxu0
      %v536 = vadd.f32 %v451, %v535
      %v537 = vpop.f32.mrb[0].mxu0
      %v538 = vpop.f32.mrb[0].mxu0
      %v539 = vpop.f32.mrb[0].mxu0
      %540 = vdwg.mxu0
      %s541 = scalar_lea.vmem %s290, 128
      %v542 = vld [vmem:[%s541] sm:$0xf]
      %v543 = vld [vmem:[%s541 + $0x4] sm:$0xf]
      %v544 = vld [vmem:[%s541 + $0x8] sm:$0xf]
      %v545 = vld [vmem:[%s541 + $0xc] sm:$0xf]
      %v546 = vld [vmem:[%s541 + $0x10] sm:$0xf]
      %v547 = vld [vmem:[%s541 + $0x14] sm:$0xf]
      %v548 = vld [vmem:[%s541 + $0x18] sm:$0xf]
      %v549 = vld [vmem:[%s541 + $0x1c] sm:$0xf]
      %v550 = vld [vmem:[%s541 + $0x20] sm:$0xf]
      %v551 = vld [vmem:[%s541 + $0x24] sm:$0xf]
      %v552 = vld [vmem:[%s541 + $0x28] sm:$0xf]
      %v553 = vld [vmem:[%s541 + $0x2c] sm:$0xf]
      %v554 = vld [vmem:[%s541 + $0x30] sm:$0xf]
      %v555 = vld [vmem:[%s541 + $0x34] sm:$0xf]
      %v556 = vld [vmem:[%s541 + $0x38] sm:$0xf]
      %v557 = vld [vmem:[%s541 + $0x3c] sm:$0xf]
      %s558 = scalar_lea.vmem %s294, 2
      %v559 = vld [vmem:[%s558] sm:$0x1]
      %v561 = vlaneseq
      %v562 = vshrl.u32 %v561, 7
      %v563 = vsub.s32 0, %v562
      %v564 = vrot.slane %v559, %v563
      %v582 = vunpack.c.l.b16 %v542
      %v583 = vunpack.c.l.b16 %v543
      %v584 = vunpack.c.l.b16 %v544
      %v585 = vunpack.c.l.b16 %v545
      %v586 = vunpack.c.l.b16 %v546
      %v587 = vunpack.c.l.b16 %v547
      %v588 = vunpack.c.l.b16 %v548
      %v589 = vunpack.c.l.b16 %v549
      %v590 = vunpack.c.l.b16 %v550
      %v591 = vunpack.c.l.b16 %v551
      %v592 = vunpack.c.l.b16 %v552
      %v593 = vunpack.c.l.b16 %v553
      %v594 = vunpack.c.l.b16 %v554
      %v595 = vunpack.c.l.b16 %v555
      %v596 = vunpack.c.l.b16 %v556
      %v597 = vunpack.c.l.b16 %v557
      %v598 = vpack.c.b16 %v583, %v582
      %v599 = vpack.c.b16 %v585, %v584
      %v600 = vpack.c.b16 %v587, %v586
      %v601 = vpack.c.b16 %v589, %v588
      %v602 = vpack.c.b16 %v591, %v590
      %v603 = vpack.c.b16 %v593, %v592
      %v604 = vpack.c.b16 %v595, %v594
      %v605 = vpack.c.b16 %v597, %v596
      %614 = vmatprep.subr.bf16.mxu0 0
      %615 = vmatpush1.bf16.msra.mxu0 %v598
      %616 = vmatprep.subr.bf16.mxu0 0
      %617 = vmatpush1.bf16.msra.mxu0 %v599
      %618 = vmatprep.subr.bf16.mxu0 0
      %619 = vmatpush1.bf16.msra.mxu0 %v600
      %620 = vmatprep.subr.bf16.mxu0 0
      %621 = vmatpush1.bf16.msra.mxu0 %v601
      %622 = vmatprep.subr.bf16.mxu0 0
      %623 = vmatpush1.bf16.msra.mxu0 %v602
      %624 = vmatprep.subr.bf16.mxu0 0
      %625 = vmatpush1.bf16.msra.mxu0 %v603
      %626 = vmatprep.subr.bf16.mxu0 0
      %627 = vmatpush1.bf16.msra.mxu0 %v604
      %628 = vmatprep.subr.bf16.mxu0 0
      %629 = vmatpush1.bf16.msra.mxu0 %v605
      %630 = vmatprep.subr.bf16.mxu0 0
      %631 = vmatpush1.bf16.msra.mxu0 0
      %632 = vmatprep.subr.bf16.mxu0 0
      %633 = vmatpush1.bf16.msra.mxu0 0
      %634 = vmatprep.subr.bf16.mxu0 0
      %635 = vmatpush1.bf16.msra.mxu0 0
      %636 = vmatprep.subr.bf16.mxu0 0
      %637 = vmatpush1.bf16.msra.mxu0 0
      %638 = vmatprep.subr.bf16.mxu0 0
      %639 = vmatpush1.bf16.msra.mxu0 0
      %640 = vmatprep.subr.bf16.mxu0 0
      %641 = vmatpush1.bf16.msra.mxu0 0
      %642 = vmatprep.subr.bf16.mxu0 0
      %643 = vmatpush1.bf16.msra.mxu0 0
      %644 = vmatprep.subr.bf16.mxu0 0
      %645 = vmatpush1.bf16.msra.mxu0 0
      %646 = vmatprep.mubr.bf16.mxu0 0
      %647 = vmatmul.mubr.bf16.gmra.mrb[0].mxu0 %v316
      %v648 = vpop.f32.mrb[0].mxu0
      %v649 = vadd.f32 %v564, %v648
      %v650 = vpop.f32.mrb[0].mxu0
      %v651 = vpop.f32.mrb[0].mxu0
      %v652 = vpop.f32.mrb[0].mxu0
      %653 = vdwg.mxu0
      %v654 = vmul.f32 %v423, %v649
      %v655 = vpack.c.bf16 %v654, %v654
      %v656 = vld [vmem:[%s299] sm:$0xf]
      %v657 = vld [vmem:[%s299 + $0x4] sm:$0xf]
      %v658 = vld [vmem:[%s299 + $0x8] sm:$0xf]
      %v659 = vld [vmem:[%s299 + $0xc] sm:$0xf]
      %v660 = vld [vmem:[%s299 + $0x10] sm:$0xf]
      %v661 = vld [vmem:[%s299 + $0x14] sm:$0xf]
      %v662 = vld [vmem:[%s299 + $0x18] sm:$0xf]
      %v663 = vld [vmem:[%s299 + $0x1c] sm:$0xf]
      %v664 = vld [vmem:[%s299 + $0x20] sm:$0xf]
      %v665 = vld [vmem:[%s299 + $0x24] sm:$0xf]
      %v666 = vld [vmem:[%s299 + $0x28] sm:$0xf]
      %v667 = vld [vmem:[%s299 + $0x2c] sm:$0xf]
      %v668 = vld [vmem:[%s299 + $0x30] sm:$0xf]
      %v669 = vld [vmem:[%s299 + $0x34] sm:$0xf]
      %v670 = vld [vmem:[%s299 + $0x38] sm:$0xf]
      %v671 = vld [vmem:[%s299 + $0x3c] sm:$0xf]
      %v688 = vunpack.c.l.b16 %v656
      %v689 = vunpack.c.l.b16 %v657
      %v690 = vunpack.c.l.b16 %v658
      %v691 = vunpack.c.l.b16 %v659
      %v692 = vunpack.c.l.b16 %v660
      %v693 = vunpack.c.l.b16 %v661
      %v694 = vunpack.c.l.b16 %v662
      %v695 = vunpack.c.l.b16 %v663
      %v696 = vunpack.c.l.b16 %v664
      %v697 = vunpack.c.l.b16 %v665
      %v698 = vunpack.c.l.b16 %v666
      %v699 = vunpack.c.l.b16 %v667
      %v700 = vunpack.c.l.b16 %v668
      %v701 = vunpack.c.l.b16 %v669
      %v702 = vunpack.c.l.b16 %v670
      %v703 = vunpack.c.l.b16 %v671
      %v704 = vpack.c.b16 %v689, %v688
      %v705 = vpack.c.b16 %v691, %v690
      %v706 = vpack.c.b16 %v693, %v692
      %v707 = vpack.c.b16 %v695, %v694
      %v708 = vpack.c.b16 %v697, %v696
      %v709 = vpack.c.b16 %v699, %v698
      %v710 = vpack.c.b16 %v701, %v700
      %v711 = vpack.c.b16 %v703, %v702
      %720 = vmatprep.subr.bf16.mxu0 0
      %721 = vmatpush1.bf16.msra.mxu0 %v704
      %722 = vmatprep.subr.bf16.mxu0 0
      %723 = vmatpush1.bf16.msra.mxu0 %v705
      %724 = vmatprep.subr.bf16.mxu0 0
      %725 = vmatpush1.bf16.msra.mxu0 %v706
      %726 = vmatprep.subr.bf16.mxu0 0
      %727 = vmatpush1.bf16.msra.mxu0 %v707
      %728 = vmatprep.subr.bf16.mxu0 0
      %729 = vmatpush1.bf16.msra.mxu0 %v708
      %730 = vmatprep.subr.bf16.mxu0 0
      %731 = vmatpush1.bf16.msra.mxu0 %v709
      %732 = vmatprep.subr.bf16.mxu0 0
      %733 = vmatpush1.bf16.msra.mxu0 %v710
      %734 = vmatprep.subr.bf16.mxu0 0
      %735 = vmatpush1.bf16.msra.mxu0 %v711
      %736 = vmatprep.subr.bf16.mxu0 0
      %737 = vmatpush1.bf16.msra.mxu0 0
      %738 = vmatprep.subr.bf16.mxu0 0
      %739 = vmatpush1.bf16.msra.mxu0 0
      %740 = vmatprep.subr.bf16.mxu0 0
      %741 = vmatpush1.bf16.msra.mxu0 0
      %742 = vmatprep.subr.bf16.mxu0 0
      %743 = vmatpush1.bf16.msra.mxu0 0
      %744 = vmatprep.subr.bf16.mxu0 0
      %745 = vmatpush1.bf16.msra.mxu0 0
      %746 = vmatprep.subr.bf16.mxu0 0
      %747 = vmatpush1.bf16.msra.mxu0 0
      %748 = vmatprep.subr.bf16.mxu0 0
      %749 = vmatpush1.bf16.msra.mxu0 0
      %750 = vmatprep.subr.bf16.mxu0 0
      %751 = vmatpush1.bf16.msra.mxu0 0
      %752 = vmatprep.mubr.bf16.mxu0 0
      %753 = vmatmul.mubr.bf16.gmra.mrb[0].mxu0 %v655
      %v754 = vpop.f32.mrb[0].mxu0
      %v755 = vadd.f32 0.0, %v754
      %v756 = vpop.f32.mrb[0].mxu0
      %v757 = vpop.f32.mrb[0].mxu0
      %v758 = vpop.f32.mrb[0].mxu0
      %759 = vdwg.mxu0
      %v760 = vmul.f32 %v536, %v755
      %v761 = vpack.c.bf16 %v760, %v760
      %s762 = scalar_lea.vmem %s299, 64
      %v763 = vld [vmem:[%s762] sm:$0xf]
      %v764 = vld [vmem:[%s762 + $0x4] sm:$0xf]
      %v765 = vld [vmem:[%s762 + $0x8] sm:$0xf]
      %v766 = vld [vmem:[%s762 + $0xc] sm:$0xf]
      %v767 = vld [vmem:[%s762 + $0x10] sm:$0xf]
      %v768 = vld [vmem:[%s762 + $0x14] sm:$0xf]
      %v769 = vld [vmem:[%s762 + $0x18] sm:$0xf]
      %v770 = vld [vmem:[%s762 + $0x1c] sm:$0xf]
      %v771 = vld [vmem:[%s762 + $0x20] sm:$0xf]
      %v772 = vld [vmem:[%s762 + $0x24] sm:$0xf]
      %v773 = vld [vmem:[%s762 + $0x28] sm:$0xf]
      %v774 = vld [vmem:[%s762 + $0x2c] sm:$0xf]
      %v775 = vld [vmem:[%s762 + $0x30] sm:$0xf]
      %v776 = vld [vmem:[%s762 + $0x34] sm:$0xf]
      %v777 = vld [vmem:[%s762 + $0x38] sm:$0xf]
      %v778 = vld [vmem:[%s762 + $0x3c] sm:$0xf]
      %v795 = vunpack.c.l.b16 %v763
      %v796 = vunpack.c.l.b16 %v764
      %v797 = vunpack.c.l.b16 %v765
      %v798 = vunpack.c.l.b16 %v766
      %v799 = vunpack.c.l.b16 %v767
      %v800 = vunpack.c.l.b16 %v768
      %v801 = vunpack.c.l.b16 %v769
      %v802 = vunpack.c.l.b16 %v770
      %v803 = vunpack.c.l.b16 %v771
      %v804 = vunpack.c.l.b16 %v772
      %v805 = vunpack.c.l.b16 %v773
      %v806 = vunpack.c.l.b16 %v774
      %v807 = vunpack.c.l.b16 %v775
      %v808 = vunpack.c.l.b16 %v776
      %v809 = vunpack.c.l.b16 %v777
      %v810 = vunpack.c.l.b16 %v778
      %v811 = vpack.c.b16 %v796, %v795
      %v812 = vpack.c.b16 %v798, %v797
      %v813 = vpack.c.b16 %v800, %v799
      %v814 = vpack.c.b16 %v802, %v801
      %v815 = vpack.c.b16 %v804, %v803
      %v816 = vpack.c.b16 %v806, %v805
      %v817 = vpack.c.b16 %v808, %v807
      %v818 = vpack.c.b16 %v810, %v809
      %827 = vmatprep.subr.bf16.mxu0 0
      %828 = vmatpush1.bf16.msra.mxu0 %v811
      %829 = vmatprep.subr.bf16.mxu0 0
      %830 = vmatpush1.bf16.msra.mxu0 %v812
      %831 = vmatprep.subr.bf16.mxu0 0
      %832 = vmatpush1.bf16.msra.mxu0 %v813
      %833 = vmatprep.subr.bf16.mxu0 0
      %834 = vmatpush1.bf16.msra.mxu0 %v814
      %835 = vmatprep.subr.bf16.mxu0 0
      %836 = vmatpush1.bf16.msra.mxu0 %v815
      %837 = vmatprep.subr.bf16.mxu0 0
      %838 = vmatpush1.bf16.msra.mxu0 %v816
      %839 = vmatprep.subr.bf16.mxu0 0
      %840 = vmatpush1.bf16.msra.mxu0 %v817
      %841 = vmatprep.subr.bf16.mxu0 0
      %842 = vmatpush1.bf16.msra.mxu0 %v818
      %843 = vmatprep.subr.bf16.mxu0 0
      %844 = vmatpush1.bf16.msra.mxu0 0
      %845 = vmatprep.subr.bf16.mxu0 0
      %846 = vmatpush1.bf16.msra.mxu0 0
      %847 = vmatprep.subr.bf16.mxu0 0
      %848 = vmatpush1.bf16.msra.mxu0 0
      %849 = vmatprep.subr.bf16.mxu0 0
      %850 = vmatpush1.bf16.msra.mxu0 0
      %851 = vmatprep.subr.bf16.mxu0 0
      %852 = vmatpush1.bf16.msra.mxu0 0
      %853 = vmatprep.subr.bf16.mxu0 0
      %854 = vmatpush1.bf16.msra.mxu0 0
      %855 = vmatprep.subr.bf16.mxu0 0
      %856 = vmatpush1.bf16.msra.mxu0 0
      %857 = vmatprep.subr.bf16.mxu0 0
      %858 = vmatpush1.bf16.msra.mxu0 0
      %859 = vmatprep.mubr.bf16.mxu0 0
      %860 = vmatmul.mubr.bf16.gmra.mrb[0].mxu0 %v761
      %v861 = vpop.f32.mrb[0].mxu0
      %v862 = vadd.f32 0.0, %v861
      %v863 = vpop.f32.mrb[0].mxu0
      %v864 = vpop.f32.mrb[0].mxu0
      %v865 = vpop.f32.mrb[0].mxu0
      %866 = vdwg.mxu0
      %v867 = vpack.c.bf16 %v862, %v862
      %v868 = vld [vmem:[%s304] sm:$0xf]
      %v869 = vld [vmem:[%s304 + $0x4] sm:$0xf]
      %v870 = vld [vmem:[%s304 + $0x8] sm:$0xf]
      %v871 = vld [vmem:[%s304 + $0xc] sm:$0xf]
      %v872 = vld [vmem:[%s304 + $0x10] sm:$0xf]
      %v873 = vld [vmem:[%s304 + $0x14] sm:$0xf]
      %v874 = vld [vmem:[%s304 + $0x18] sm:$0xf]
      %v875 = vld [vmem:[%s304 + $0x1c] sm:$0xf]
      %v876 = vld [vmem:[%s304 + $0x20] sm:$0xf]
      %v877 = vld [vmem:[%s304 + $0x24] sm:$0xf]
      %v878 = vld [vmem:[%s304 + $0x28] sm:$0xf]
      %v879 = vld [vmem:[%s304 + $0x2c] sm:$0xf]
      %v880 = vld [vmem:[%s304 + $0x30] sm:$0xf]
      %v881 = vld [vmem:[%s304 + $0x34] sm:$0xf]
      %v882 = vld [vmem:[%s304 + $0x38] sm:$0xf]
      %v883 = vld [vmem:[%s304 + $0x3c] sm:$0xf]
      %v900 = vunpack.c.l.b16 %v868
      %v901 = vunpack.c.l.b16 %v869
      %v902 = vunpack.c.l.b16 %v870
      %v903 = vunpack.c.l.b16 %v871
      %v904 = vunpack.c.l.b16 %v872
      %v905 = vunpack.c.l.b16 %v873
      %v906 = vunpack.c.l.b16 %v874
      %v907 = vunpack.c.l.b16 %v875
      %v908 = vunpack.c.l.b16 %v876
      %v909 = vunpack.c.l.b16 %v877
      %v910 = vunpack.c.l.b16 %v878
      %v911 = vunpack.c.l.b16 %v879
      %v912 = vunpack.c.l.b16 %v880
      %v913 = vunpack.c.l.b16 %v881
      %v914 = vunpack.c.l.b16 %v882
      %v915 = vunpack.c.l.b16 %v883
      %v916 = vpack.c.b16 %v901, %v900
      %v917 = vpack.c.b16 %v903, %v902
      %v918 = vpack.c.b16 %v905, %v904
      %v919 = vpack.c.b16 %v907, %v906
      %v920 = vpack.c.b16 %v909, %v908
      %v921 = vpack.c.b16 %v911, %v910
      %v922 = vpack.c.b16 %v913, %v912
      %v923 = vpack.c.b16 %v915, %v914
      %932 = vmatprep.subr.bf16.mxu0 0
      %933 = vmatpush1.bf16.msra.mxu0 %v916
      %934 = vmatprep.subr.bf16.mxu0 0
      %935 = vmatpush1.bf16.msra.mxu0 %v917
      %936 = vmatprep.subr.bf16.mxu0 0
      %937 = vmatpush1.bf16.msra.mxu0 %v918
      %938 = vmatprep.subr.bf16.mxu0 0
      %939 = vmatpush1.bf16.msra.mxu0 %v919
      %940 = vmatprep.subr.bf16.mxu0 0
      %941 = vmatpush1.bf16.msra.mxu0 %v920
      %942 = vmatprep.subr.bf16.mxu0 0
      %943 = vmatpush1.bf16.msra.mxu0 %v921
      %944 = vmatprep.subr.bf16.mxu0 0
      %945 = vmatpush1.bf16.msra.mxu0 %v922
      %946 = vmatprep.subr.bf16.mxu0 0
      %947 = vmatpush1.bf16.msra.mxu0 %v923
      %948 = vmatprep.subr.bf16.mxu0 0
      %949 = vmatpush1.bf16.msra.mxu0 0
      %950 = vmatprep.subr.bf16.mxu0 0
      %951 = vmatpush1.bf16.msra.mxu0 0
      %952 = vmatprep.subr.bf16.mxu0 0
      %953 = vmatpush1.bf16.msra.mxu0 0
      %954 = vmatprep.subr.bf16.mxu0 0
      %955 = vmatpush1.bf16.msra.mxu0 0
      %956 = vmatprep.subr.bf16.mxu0 0
      %957 = vmatpush1.bf16.msra.mxu0 0
      %958 = vmatprep.subr.bf16.mxu0 0
      %959 = vmatpush1.bf16.msra.mxu0 0
      %960 = vmatprep.subr.bf16.mxu0 0
      %961 = vmatpush1.bf16.msra.mxu0 0
      %962 = vmatprep.subr.bf16.mxu0 0
      %963 = vmatpush1.bf16.msra.mxu0 0
      %964 = vmatprep.mubr.bf16.mxu0 0
      %965 = vmatmul.mubr.bf16.gmra.mrb[0].mxu0 %v867
      %v966 = vpop.f32.mrb[0].mxu0
      %v967 = vadd.f32 0.0, %v966
      %v968 = vpop.f32.mrb[0].mxu0
      %v969 = vpop.f32.mrb[0].mxu0
      %v970 = vpop.f32.mrb[0].mxu0
      %971 = vdwg.mxu0
      %v972 = vadd.f32 %v315, %v967
      %v973 = vld [vmem:[%s307] sm:$0x1]
      %v975 = vlaneseq
      %v976 = vshrl.u32 %v975, 7
      %v977 = vsub.s32 0, %v976
      %v978 = vrot.slane %v973, %v977
      %v980 = vadd.f32 %v972, %v978
      %981 = vst [vmem:[#allocation2] sm:$0xf] %v980
      %v982 = vld [vmem:[#allocation2] sm:$0xf]
      %983 = vst [vmem:[%s6] sm:$0xf] %v982
      // Predicated region
      $region49: #{_lambda_.3} parent=43 // pred_check
        %p984 = pneg %p181
      $region50: #{_lambda_.3} parent=43 // pred_check_branch
        %986 = sbr.rel (%p984) target = $region52
      $region51: #{_lambda_.3} parent=43 // pred_region
        _
      $region52: #{_lambda_.3} parent=43 // pred_fallthru
        _
      // Predicated region
      $region53: #{_lambda_.3} parent=43 // pred_check
        %p987 = pneg %p181
      $region54: #{_lambda_.3} parent=43 // pred_check_branch
        %989 = sbr.rel (%p987) target = $region56
      $region55: #{_lambda_.3} parent=43 // pred_region
        _
      $region56: #{_lambda_.3} parent=43 // pred_fallthru
        _
    $region44: #{_lambda_.3} parent=5 // pred_fallthru
      _
    %p990 = scmp.le.s32.totalorder 2, %s12
    // Predicated region
    $region57: #{_lambda_.3} parent=5 // pred_check
      %p991 = pneg %p990
    $region58: #{_lambda_.3} parent=5 // pred_check_branch
      %993 = sbr.rel (%p991) target = $region60
    $region59: #{_lambda_.3} parent=5 // pred_region
      %s994 = ssub.s32 %s12, 2
    $region60: #{_lambda_.3} parent=5 // pred_fallthru
      _
  $region6: #{_lambda_.3} parent=0 // loop_footer
    %s16 = sadd.s32 1, %s12
  $region7: #{_lambda_.3} parent=0 // loop_footer_branch
    %11 = sbr.rel target = $region3
  $region8: #{_lambda_.3} parent=0 // loop_exit
    _

</llo_original>
